<compile_context>
chip_gen: v7x
topology: tpu7x:2x2x1
jax: 0.10.0
libtpu: 0.0.40
codegen_flags: <defaults>
</compile_context>

<pallas_src>
import functools
import numpy as np
import jax
import jax.numpy as jnp
from jax.experimental import pallas as pl
from jax.experimental.pallas import tpu as pltpu


# ----------------------------------------------------------------------------
# Pallas kernel: one feature-major row-tile per grid step.
# ----------------------------------------------------------------------------
def path_encoder_kernel(act_ref, w1ft_ref, b1ft_ref, mbigt_ref, cbigt_ref,
                        wfcft_ref, bfcft_ref, out_ref, *, dim):
    f32 = jnp.float32
    a12t = act_ref[0:4 * dim, :]                                     # (4D, T) bf16
    a3t = act_ref[4 * dim:6 * dim, :]                                # (2D, T) bf16

    # h3^T = w1f^T @ a3^T + b1f   (bn0 ∘ W1 ∘ bn2 folded offline)
    h3t = jnp.dot(w1ft_ref[...], a3t,
                  preferred_element_type=f32) + b1ft_ref[...]        # (D, T)

    # conv^T = Mbig^T @ a12^T + cbig  (bn0/W1/bn2/stack/b1/Conv2d folded)
    convt = jnp.dot(mbigt_ref[...], a12t,
                    preferred_element_type=f32) + cbigt_ref[...]     # (C, T)
    xt = jnp.maximum(convt, 0.0).astype(wfcft_ref.dtype)             # relu -> bf16

    # y^T = wfcf^T @ x^T + bfcf  (post-fc bn2 folded), then relu.
    yt = jnp.dot(wfcft_ref[...], xt,
                 preferred_element_type=f32) + bfcft_ref[...]        # (D, T)
    yt = jnp.maximum(yt, 0.0)

    # Per-row dot <y, h3>: sublane (feature-axis) reduce -> lane-dense (1, T).
    out_ref[...] = jax.nn.sigmoid(jnp.sum(yt * h3t, axis=0, keepdims=True))


# ----------------------------------------------------------------------------
# Offline construction of the conv-as-matmul operator (exact linear map).
# ----------------------------------------------------------------------------
def build_conv_matrix(conv_w, conv_b, H, W):
    """flatten(conv2d(x)) = flatten(x) @ M + bflat, PyTorch NCHW (c,h,w) order."""
    conv_w = np.asarray(conv_w)
    conv_b = np.asarray(conv_b)
    c_out = conv_w.shape[0]
    Ho, Wo = H - 2, W - 2
    M = np.zeros((H * W, c_out * Ho * Wo), dtype=np.float32)
    for c in range(c_out):
        for i in range(Ho):
            for j in range(Wo):
                col = c * Ho * Wo + i * Wo + j
                for ki in range(3):
                    for kj in range(3):
                        row = (i + ki) * W + (j + kj)
                        M[row, col] += conv_w[c, 0, ki, kj]
    bflat = np.repeat(conv_b, Ho * Wo).astype(np.float32)
    return M, bflat


# ----------------------------------------------------------------------------
# Wrapper: embedding gather, BN folding, tiling, pallas_call.
# ----------------------------------------------------------------------------
def _bn_affine(gamma, beta, mean, var, eps=1e-5):
    s = gamma / jnp.sqrt(var + eps)
    return s, beta - mean * s


def _round_up(x, m):
    return ((x + m - 1) // m) * m


def _choose_tiling(n_rows):
    """Generation-aware row tile + scoped-VMEM limit."""
    try:
        vmem_cap = int(pltpu.get_tpu_info().vmem_capacity_bytes)
    except Exception:
        vmem_cap = 64 * 1024 * 1024
    if vmem_cap >= 100 * 1024 * 1024:            # v5e / v6e: 128 MiB physical
        tile_cap, limit = 2048, 64 * 1024 * 1024
    else:                                        # v7x: 64 MiB physical
        tile_cap, limit = 2048, 48 * 1024 * 1024
    # Keep >= 2 tiles for reasonably sized N so the "parallel" row axis gives
    # both v7x TensorCores (and megacore on v6e) work.
    if n_rows >= 256:
        tile_cap = min(tile_cap, _round_up(-(-n_rows // 2), 128))
    tile = min(tile_cap, _round_up(max(n_rows, 1), 128))
    return tile, limit


def path_encoder_conv_forward(path, params, d1, d2):
    """path: (B, P, 6) int32 columns [r0,e0,r1,e1,r2,e2]; returns (B, P) float32."""
    B, P, _ = path.shape
    D = d1 * d2                                  # entity_dim
    Ho, Wo = 2 * d1 - 2, d2 - 2
    C = 32 * Ho * Wo
    N = B * P

    ent = params["entity_emb"]
    rel = params["relation_emb"]

    # Embedding gather -> one feature-major bf16 activation slab (6D, N).
    cols = [rel[path[..., 0]], ent[path[..., 1]],
            rel[path[..., 2]], ent[path[..., 3]],
            rel[path[..., 4]], ent[path[..., 5]]]
    act = jnp.concatenate([c.reshape(N, D) for c in cols], axis=1)    # (N, 6D)
    actT = act.astype(jnp.bfloat16).T                                 # (6D, N)

    # Fold BatchNorms (eval, running stats) into the linear operators.
    s0, t0 = _bn_affine(params["bn0_gamma"], params["bn0_beta"],
                        params["bn0_mean"], params["bn0_var"])
    s2, t2 = _bn_affine(params["bn2_gamma"], params["bn2_beta"],
                        params["bn2_mean"], params["bn2_var"])
    sb1, tb1 = _bn_affine(params["b1_gamma"], params["b1_beta"],
                          params["b1_mean"], params["b1_var"])

    w1t = params["W1_weight"].T                                   # (2D, D)
    w1f = (s0[:, None] * w1t) * s2[None, :]                       # bn0 ∘ W1 ∘ bn2
    b1f = (t0 @ w1t + params["W1_bias"]) * s2 + t2                # (D,)

    mconv_np, bconv_np = build_conv_matrix(params["conv1_weight"],
                                           params["conv1_bias"], 2 * d1, d2)
    mconv = jnp.asarray(mconv_np)                                 # (2D, C)
    bconv = jnp.asarray(bconv_np)                                 # (C,)
    msc = sb1[0] * mconv                                          # fold b1 scale
    cb0 = tb1[0] * jnp.sum(mconv, axis=0) + bconv                 # fold b1 bias
    mtop, mbot = msc[:D], msc[D:]
    mbig = jnp.concatenate([w1f @ mtop, w1f @ mbot], axis=0)      # (4D, C)
    cbig = b1f @ (mtop + mbot) + cb0                              # (C,)

    wfcf = params["fc_weight"].T * s2[None, :]                    # (C, D), bn2 folded
    bfcf = params["fc_bias"] * s2 + t2                            # (D,)

    # Transposed (feature-major) bf16 matmul operands; biases stay f32 columns.
    cdt = jnp.bfloat16
    w1ft = w1f.T.astype(cdt)                                      # (D, 2D)
    mbigt = mbig.T.astype(cdt)                                    # (C, 4D)
    wfcft = wfcf.T.astype(cdt)                                    # (D, C)
    b1ft = b1f.reshape(D, 1).astype(jnp.float32)
    cbigt = cbig.reshape(C, 1).astype(jnp.float32)
    bfcft = bfcf.reshape(D, 1).astype(jnp.float32)

    # Row tiling / padding (rows live in the lane dimension).
    tile_n, vmem_limit = _choose_tiling(N)
    n_pad = _round_up(N, tile_n)
    num_tiles = n_pad // tile_n
    actTp = jnp.pad(actT, ((0, 0), (0, n_pad - N)))

    kernel = functools.partial(path_encoder_kernel, dim=D)

    grid_spec = pltpu.PrefetchScalarGridSpec(
        num_scalar_prefetch=0,
        grid=(num_tiles,),
        in_specs=[
            pl.BlockSpec((6 * D, tile_n), lambda i: (0, i)),      # activations (streamed)
            pl.BlockSpec((D, 2 * D), lambda i: (0, 0)),           # w1f^T  (resident)
            pl.BlockSpec((D, 1), lambda i: (0, 0)),               # b1f
            pl.BlockSpec((C, 4 * D), lambda i: (0, 0)),           # Mbig^T (resident)
            pl.BlockSpec((C, 1), lambda i: (0, 0)),               # cbig
            pl.BlockSpec((D, C), lambda i: (0, 0)),               # wfcf^T (resident)
            pl.BlockSpec((D, 1), lambda i: (0, 0)),               # bfcf
        ],
        out_specs=pl.BlockSpec((1, tile_n), lambda i: (0, i)),
    )

    flops = 2 * n_pad * (4 * D * C + C * D + 2 * D * D + D)
    bytes_accessed = (n_pad * 6 * D * 2 + n_pad * 4
                      + (4 * D * C + C * D + 2 * D * D) * 2 + (C + 2 * D) * 4)
    cost = pl.CostEstimate(flops=flops, transcendentals=n_pad,
                           bytes_accessed=bytes_accessed)

    out = pl.pallas_call(
        kernel,
        out_shape=jax.ShapeDtypeStruct((1, n_pad), jnp.float32),
        grid_spec=grid_spec,
        compiler_params=pltpu.CompilerParams(
            dimension_semantics=("parallel",),
            vmem_limit_bytes=vmem_limit),
        cost_estimate=cost,
    )(actTp, w1ft, b1ft, mbigt, cbigt, wfcft, bfcft)

    return out[0, :N].reshape(B, P)


# ----------------------------------------------------------------------------
# Pure-JAX reference (un-folded, mirrors the PyTorch module in eval mode).
# ----------------------------------------------------------------------------
def reference_forward(path, params, d1, d2, eps=1e-5):
    B, P, _ = path.shape
    ent, rel = params["entity_emb"], params["relation_emb"]

    def bn(x, g, b, m, v):
        return (x - m) / jnp.sqrt(v + eps) * g + b

    w1t = params["W1_weight"].T
    outs = []
    for j in range(P):
        r0 = rel[path[:, j, 0]]; e0 = ent[path[:, j, 1]]
        r1 = rel[path[:, j, 2]]; e1 = ent[path[:, j, 3]]
        r2 = rel[path[:, j, 4]]; e2 = ent[path[:, j, 5]]
        a1 = jnp.concatenate([r0, e0], axis=1)
        a2 = jnp.concatenate([r1, e1], axis=1)
        a3 = jnp.concatenate([r2, e2], axis=1)
        a1 = bn(a1, params["bn0_gamma"], params["bn0_beta"], params["bn0_mean"], params["bn0_var"])
        a2 = bn(a2, params["bn0_gamma"], params["bn0_beta"], params["bn0_mean"], params["bn0_var"])
        a3 = bn(a3, params["bn0_gamma"], params["bn0_beta"], params["bn0_mean"], params["bn0_var"])
        h1 = bn(a1 @ w1t + params["W1_bias"], params["bn2_gamma"], params["bn2_beta"],
                params["bn2_mean"], params["bn2_var"])
        h2 = bn(a2 @ w1t + params["W1_bias"], params["bn2_gamma"], params["bn2_beta"],
                params["bn2_mean"], params["bn2_var"])
        h3 = bn(a3 @ w1t + params["W1_bias"], params["bn2_gamma"], params["bn2_beta"],
                params["bn2_mean"], params["bn2_var"])
        h1m = h1.reshape(B, 1, d1, d2)
        h2m = h2.reshape(B, 1, d1, d2)
        stack = jnp.concatenate([h1m, h2m], axis=2)
        stack = bn(stack, params["b1_gamma"], params["b1_beta"], params["b1_mean"], params["b1_var"])
        x = jax.lax.conv_general_dilated(stack, params["conv1_weight"], (1, 1), "VALID",
                                         dimension_numbers=("NCHW", "OIHW", "NCHW"))
        x = x + params["conv1_bias"].reshape(1, 32, 1, 1)
        x = jnp.maximum(x, 0.0).reshape(B, -1)
        x = x @ params["fc_weight"].T + params["fc_bias"]
        x = bn(x, params["bn2_gamma"], params["bn2_beta"], params["bn2_mean"], params["bn2_var"])
        x = jnp.maximum(x, 0.0)
        outs.append(jax.nn.sigmoid(jnp.sum(x * h3, axis=1, keepdims=True)))
    return jnp.concatenate(outs, axis=1)


# ----------------------------------------------------------------------------
# Deterministic parameter init + example run
# ----------------------------------------------------------------------------
def init_params(key, num_entity, num_relation, d1, d2):
    D = d1 * d2
    Ho, Wo = 2 * d1 - 2, d2 - 2
    fc_in = 32 * Ho * Wo
    ks = jax.random.split(key, 16)

    def nrm(k, shape, std):
        return (std * jax.random.normal(k, shape)).astype(jnp.float32)

    return {
        "entity_emb":   nrm(ks[0], (num_entity, D), 0.1),
        "relation_emb": nrm(ks[1], (num_relation, D), 0.1),
        "W1_weight":    nrm(ks[2], (D, 2 * D), 0.1),          # (out, in) as nn.Linear
        "W1_bias":      nrm(ks[3], (D,), 0.05),
        "bn0_gamma":    1.0 + nrm(ks[4], (2 * D,), 0.05),
        "bn0_beta":     nrm(ks[5], (2 * D,), 0.05),
        "bn0_mean":     nrm(ks[12], (2 * D,), 0.05),
        "bn0_var":      1.0 + jnp.abs(nrm(ks[13], (2 * D,), 0.05)),
        "bn2_gamma":    1.0 + nrm(ks[6], (D,), 0.05),
        "bn2_beta":     nrm(ks[7], (D,), 0.05),
        "bn2_mean":     nrm(ks[14], (D,), 0.05),
        "bn2_var":      1.0 + jnp.abs(nrm(ks[15], (D,), 0.05)),
        "b1_gamma":     jnp.asarray([1.05], dtype=jnp.float32),
        "b1_beta":      jnp.asarray([0.02], dtype=jnp.float32),
        "b1_mean":      jnp.asarray([0.01], dtype=jnp.float32),
        "b1_var":       jnp.asarray([1.1], dtype=jnp.float32),
        "conv1_weight": nrm(ks[8], (32, 1, 3, 3), 0.1),
        "conv1_bias":   nrm(ks[9], (32,), 0.05),
        "fc_weight":    nrm(ks[10], (D, fc_in), 0.02),        # (out, in) as nn.Linear
        "fc_bias":      nrm(ks[11], (D,), 0.05),
    }


if __name__ == "__main__":
    # entity_dim = emb_2D_d1 * emb_2D_d2 = 4 * 8 = 32
    B, P = 2, 3
    d1, d2 = 4, 8
    num_entity, num_relation = 10, 7

    key = jax.random.PRNGKey(0)
    kparams, kr, ke = jax.random.split(key, 3)
    params = init_params(kparams, num_entity, num_relation, d1, d2)

    # path: (B, P, 6) with columns [r0, e0, r1, e1, r2, e2]
    rels = jax.random.randint(kr, (B, P, 3), 0, num_relation, dtype=jnp.int32)
    ents = jax.random.randint(ke, (B, P, 3), 0, num_entity, dtype=jnp.int32)
    path = jnp.stack(
        [rels[..., 0], ents[..., 0], rels[..., 1], ents[..., 1], rels[..., 2], ents[..., 2]],
        axis=-1,
    )

    out = path_encoder_conv_forward(path, params, d1, d2)
    out = jax.block_until_ready(out)
    assert out.shape == (B, P), out.shape
    assert bool(jnp.all(jnp.isfinite(out)))

    ref = jax.block_until_ready(reference_forward(path, params, d1, d2))
    max_err = float(jnp.max(jnp.abs(out - ref)))
    assert max_err < 5e-2, f"mismatch vs reference: {max_err}"

    print("KERNEL_OK")
</pallas_src>

<mosaic_0001>
module attributes {stable_mosaic.version = 11 : i64} {
  func.func @path_encoder_kernel(%arg0: i32, %arg1: memref<192x128xbf16, #tpu.memory_space<vmem>>, %arg2: memref<32x64xbf16, #tpu.memory_space<vmem>>, %arg3: memref<32x1xf32, #tpu.memory_space<vmem>>, %arg4: memref<1152x128xbf16, #tpu.memory_space<vmem>>, %arg5: memref<1152x1xf32, #tpu.memory_space<vmem>>, %arg6: memref<32x1152xbf16, #tpu.memory_space<vmem>>, %arg7: memref<32x1xf32, #tpu.memory_space<vmem>>, %arg8: memref<1x128xf32, #tpu.memory_space<vmem>>) attributes {dimension_semantics = [#tpu.dimension_semantics<parallel>], iteration_bounds = array<i64: 1>, scalar_prefetch = 0 : i64, scratch_operands = 0 : i64, tpu.core_type = #tpu.core_type<tc>, window_params = [{transform_indices = @transform_0, window_bounds = array<i64: 192, 128>}, {pipeline_mode = #tpu.pipeline_mode<synchronous>, transform_indices = @transform_1, window_bounds = array<i64: 32, 64>}, {pipeline_mode = #tpu.pipeline_mode<synchronous>, transform_indices = @transform_2, window_bounds = array<i64: 32, 1>}, {pipeline_mode = #tpu.pipeline_mode<synchronous>, transform_indices = @transform_3, window_bounds = array<i64: 1152, 128>}, {pipeline_mode = #tpu.pipeline_mode<synchronous>, transform_indices = @transform_4, window_bounds = array<i64: 1152, 1>}, {pipeline_mode = #tpu.pipeline_mode<synchronous>, transform_indices = @transform_5, window_bounds = array<i64: 32, 1152>}, {pipeline_mode = #tpu.pipeline_mode<synchronous>, transform_indices = @transform_6, window_bounds = array<i64: 32, 1>}, {transform_indices = @transform_7, window_bounds = array<i64: 1, 128>}]} {
    %c0 = arith.constant 0 : index
    %c0_0 = arith.constant 0 : index
    %0 = vector.load %arg1[%c0, %c0_0] : memref<192x128xbf16, #tpu.memory_space<vmem>>, vector<128x128xbf16>
    %c128 = arith.constant 128 : index
    %c0_1 = arith.constant 0 : index
    %1 = vector.load %arg1[%c128, %c0_1] : memref<192x128xbf16, #tpu.memory_space<vmem>>, vector<64x128xbf16>
    %c0_2 = arith.constant 0 : index
    %c0_3 = arith.constant 0 : index
    %2 = vector.load %arg2[%c0_2, %c0_3] : memref<32x64xbf16, #tpu.memory_space<vmem>>, vector<32x64xbf16>
    %cst = arith.constant dense<0.000000e+00> : vector<32x128xf32>
    %3 = tpu.matmul %2, %1, %cst {dimension_numbers = #tpu.dot_dimension_numbers<[1], [0], [0], [1], [0, 0, 1, 1], [], []>} : vector<32x64xbf16>, vector<64x128xbf16>, vector<32x128xf32> -> vector<32x128xf32>
    %c0_4 = arith.constant 0 : index
    %c0_5 = arith.constant 0 : index
    %4 = vector.load %arg3[%c0_4, %c0_5] : memref<32x1xf32, #tpu.memory_space<vmem>>, vector<32x1xf32>
    %5 = vector.broadcast %4 : vector<32x1xf32> to vector<32x128xf32>
    %6 = arith.addf %3, %5 : vector<32x128xf32>
    %c0_6 = arith.constant 0 : index
    %c0_7 = arith.constant 0 : index
    %7 = vector.load %arg4[%c0_6, %c0_7] : memref<1152x128xbf16, #tpu.memory_space<vmem>>, vector<1152x128xbf16>
    %cst_8 = arith.constant dense<0.000000e+00> : vector<1152x128xf32>
    %8 = tpu.matmul %7, %0, %cst_8 {dimension_numbers = #tpu.dot_dimension_numbers<[1], [0], [0], [1], [0, 0, 1, 1], [], []>} : vector<1152x128xbf16>, vector<128x128xbf16>, vector<1152x128xf32> -> vector<1152x128xf32>
    %c0_9 = arith.constant 0 : index
    %c0_10 = arith.constant 0 : index
    %9 = vector.load %arg5[%c0_9, %c0_10] : memref<1152x1xf32, #tpu.memory_space<vmem>>, vector<1152x1xf32>
    %10 = vector.broadcast %9 : vector<1152x1xf32> to vector<1152x128xf32>
    %11 = arith.addf %8, %10 : vector<1152x128xf32>
    %cst_11 = arith.constant 0.000000e+00 : f32
    %12 = vector.broadcast %cst_11 : f32 to vector<1152x128xf32>
    %13 = arith.maximumf %11, %12 : vector<1152x128xf32>
    %14 = arith.truncf %13 : vector<1152x128xf32> to vector<1152x128xbf16>
    %c0_12 = arith.constant 0 : index
    %c0_13 = arith.constant 0 : index
    %15 = vector.load %arg6[%c0_12, %c0_13] : memref<32x1152xbf16, #tpu.memory_space<vmem>>, vector<32x1152xbf16>
    %cst_14 = arith.constant dense<0.000000e+00> : vector<32x128xf32>
    %16 = tpu.matmul %15, %14, %cst_14 {dimension_numbers = #tpu.dot_dimension_numbers<[1], [0], [0], [1], [0, 0, 1, 1], [], []>} : vector<32x1152xbf16>, vector<1152x128xbf16>, vector<32x128xf32> -> vector<32x128xf32>
    %c0_15 = arith.constant 0 : index
    %c0_16 = arith.constant 0 : index
    %17 = vector.load %arg7[%c0_15, %c0_16] : memref<32x1xf32, #tpu.memory_space<vmem>>, vector<32x1xf32>
    %18 = vector.broadcast %17 : vector<32x1xf32> to vector<32x128xf32>
    %19 = arith.addf %16, %18 : vector<32x128xf32>
    %cst_17 = arith.constant 0.000000e+00 : f32
    %20 = vector.broadcast %cst_17 : f32 to vector<32x128xf32>
    %21 = arith.maximumf %19, %20 : vector<32x128xf32>
    %22 = arith.mulf %21, %6 : vector<32x128xf32>
    %cst_18 = arith.constant dense<0.000000e+00> : vector<128xf32>
    %23 = vector.multi_reduction <add>, %22, %cst_18 [0] : vector<32x128xf32> to vector<128xf32>
    %24 = vector.shape_cast %23 : vector<128xf32> to vector<1x128xf32>
    %25 = arith.negf %24 : vector<1x128xf32>
    %26 = math.exp %25 : vector<1x128xf32>
    %cst_19 = arith.constant 1.000000e+00 : f32
    %27 = vector.broadcast %cst_19 : f32 to vector<1x128xf32>
    %28 = arith.addf %27, %26 : vector<1x128xf32>
    %29 = arith.divf %27, %28 : vector<1x128xf32>
    %c0_20 = arith.constant 0 : index
    %c0_21 = arith.constant 0 : index
    %30 = vector.load %arg8[%c0_20, %c0_21] : memref<1x128xf32, #tpu.memory_space<vmem>>, vector<1x128xf32>
    tpu.vector_store %arg8[%c0_20, %c0_21], %29 {strides = array<i32>} : memref<1x128xf32, #tpu.memory_space<vmem>>, vector<1x128xf32>,
    return
  }
  func.func @transform_0(%arg0: i32) -> (i32, i32) {
    %c0_i32 = arith.constant 0 : i32
    %c0_i32_0 = arith.constant 0 : i32
    return %c0_i32, %arg0 : i32, i32
  }
  func.func @transform_1(%arg0: i32) -> (i32, i32) {
    %c0_i32 = arith.constant 0 : i32
    %c0_i32_0 = arith.constant 0 : i32
    %c0_i32_1 = arith.constant 0 : i32
    return %c0_i32, %c0_i32_0 : i32, i32
  }
  func.func @transform_2(%arg0: i32) -> (i32, i32) {
    %c0_i32 = arith.constant 0 : i32
    %c0_i32_0 = arith.constant 0 : i32
    %c0_i32_1 = arith.constant 0 : i32
    return %c0_i32, %c0_i32_0 : i32, i32
  }
  func.func @transform_3(%arg0: i32) -> (i32, i32) {
    %c0_i32 = arith.constant 0 : i32
    %c0_i32_0 = arith.constant 0 : i32
    %c0_i32_1 = arith.constant 0 : i32
    return %c0_i32, %c0_i32_0 : i32, i32
  }
  func.func @transform_4(%arg0: i32) -> (i32, i32) {
    %c0_i32 = arith.constant 0 : i32
    %c0_i32_0 = arith.constant 0 : i32
    %c0_i32_1 = arith.constant 0 : i32
    return %c0_i32, %c0_i32_0 : i32, i32
  }
  func.func @transform_5(%arg0: i32) -> (i32, i32) {
    %c0_i32 = arith.constant 0 : i32
    %c0_i32_0 = arith.constant 0 : i32
    %c0_i32_1 = arith.constant 0 : i32
    return %c0_i32, %c0_i32_0 : i32, i32
  }
  func.func @transform_6(%arg0: i32) -> (i32, i32) {
    %c0_i32 = arith.constant 0 : i32
    %c0_i32_0 = arith.constant 0 : i32
    %c0_i32_1 = arith.constant 0 : i32
    return %c0_i32, %c0_i32_0 : i32, i32
  }
  func.func @transform_7(%arg0: i32) -> (i32, i32) {
    %c0_i32 = arith.constant 0 : i32
    %c0_i32_0 = arith.constant 0 : i32
    return %c0_i32, %arg0 : i32, i32
  }
}

</mosaic_0001>

<llo_original>
// kernel: tpu_custom_call.1
$region0: #{tpu_custom_call.1}
  #allocation0 [shape = 'u32[]', space=smem, size = 0x4, offset = 0x4, fixed_abs, tag = 'smem constant byte address 0x4 - core index']
  #allocation1 [shape = 'u32[144,128]{1,0:T(1,128)}', space=vmem, size = 0x12000, scoped, tag = 'internal scratch']
  %s0 = inlined_call_operand.vmem [shape: bf16[192,128], index: 0, kind: input, shape index: {}]
  %s1 = inlined_call_operand.vmem [shape: bf16[32,64], index: 1, kind: input, shape index: {}]
  %s2 = inlined_call_operand.vmem [shape: f32[32,1], index: 2, kind: input, shape index: {}]
  %s3 = inlined_call_operand.vmem [shape: bf16[1152,128], index: 3, kind: input, shape index: {}]
  %s4 = inlined_call_operand.vmem [shape: f32[1152,1], index: 4, kind: input, shape index: {}]
  %s5 = inlined_call_operand.vmem [shape: bf16[32,1152], index: 5, kind: input, shape index: {}]
  %s6 = inlined_call_operand.vmem [shape: f32[32,1], index: 6, kind: input, shape index: {}]
  %s7 = inlined_call_operand.hbm [shape: f32[1,128], index: 7, kind: output, shape index: {}]
  %s8 = sld [smem:[#allocation0]]
  $region38: #{tpu_custom_call.1} parent=0
    _
  %s10 = ssub.s32 1, %s8
  %s11 = scalar_select 0, %s10, %s8
  $region1: #{tpu_custom_call.1} parent=0
    #allocation2 [shape = 'u8[512]{0}', space=vmem, size = 0x400, scoped, tag = 'output window, operand 0, single buffered']
    #allocation3 [shape = 's32[1]{0}', space=sflag, size = 0x4, scoped, tag = 'scoped memory for tpu_custom_call.1']
    %12 = vsyncpa [#allocation3], 0
    // Predicated region
    $region2: #{tpu_custom_call.1} parent=1 // pred_check
      _
    $region3: #{tpu_custom_call.1} parent=1 // pred_check_branch
      %14 = sbr.rel (0) target = $region5
    $region4: #{tpu_custom_call.1} parent=1 // pred_region
      _
    $region5: #{tpu_custom_call.1} parent=1 // pred_fallthru
      _
    // Predicated region
    $region6: #{tpu_custom_call.1} parent=1 // pred_check
      _
    $region7: #{tpu_custom_call.1} parent=1 // pred_check_branch
      %16 = sbr.rel (0) target = $region9
    $region8: #{tpu_custom_call.1} parent=1 // pred_region
      _
    $region9: #{tpu_custom_call.1} parent=1 // pred_fallthru
      _
    // Predicated region
    $region10: #{tpu_custom_call.1} parent=1 // pred_check
      _
    $region11: #{tpu_custom_call.1} parent=1 // pred_check_branch
      %18 = sbr.rel (0) target = $region13
    $region12: #{tpu_custom_call.1} parent=1 // pred_region
      _
    $region13: #{tpu_custom_call.1} parent=1 // pred_fallthru
      _
    // Predicated region
    $region14: #{tpu_custom_call.1} parent=1 // pred_check
      _
    $region15: #{tpu_custom_call.1} parent=1 // pred_check_branch
      %20 = sbr.rel (0) target = $region17
    $region16: #{tpu_custom_call.1} parent=1 // pred_region
      _
    $region17: #{tpu_custom_call.1} parent=1 // pred_fallthru
      _
    // Predicated region
    $region18: #{tpu_custom_call.1} parent=1 // pred_check
      _
    $region19: #{tpu_custom_call.1} parent=1 // pred_check_branch
      %22 = sbr.rel (0) target = $region21
    $region20: #{tpu_custom_call.1} parent=1 // pred_region
      _
    $region21: #{tpu_custom_call.1} parent=1 // pred_fallthru
      _
    // Predicated region
    $region22: #{tpu_custom_call.1} parent=1 // pred_check
      _
    $region23: #{tpu_custom_call.1} parent=1 // pred_check_branch
      %24 = sbr.rel (0) target = $region25
    $region24: #{tpu_custom_call.1} parent=1 // pred_region
      _
    $region25: #{tpu_custom_call.1} parent=1 // pred_fallthru
      _
    // Predicated region
    $region26: #{tpu_custom_call.1} parent=1 // pred_check
      _
    $region27: #{tpu_custom_call.1} parent=1 // pred_check_branch
      %26 = sbr.rel (0) target = $region29
    $region28: #{tpu_custom_call.1} parent=1 // pred_region
      _
    $region29: #{tpu_custom_call.1} parent=1 // pred_fallthru
      _
    %v28 = vld [vmem:[%s0] sm:$0xf]
    %v29 = vld [vmem:[%s0 + $0x4] sm:$0xf]
    %v30 = vld [vmem:[%s0 + $0x8] sm:$0xf]
    %v31 = vld [vmem:[%s0 + $0xc] sm:$0xf]
    %v32 = vld [vmem:[%s0 + $0x10] sm:$0xf]
    %v33 = vld [vmem:[%s0 + $0x14] sm:$0xf]
    %v34 = vld [vmem:[%s0 + $0x18] sm:$0xf]
    %v35 = vld [vmem:[%s0 + $0x1c] sm:$0xf]
    %v36 = vld [vmem:[%s0 + $0x20] sm:$0xf]
    %v37 = vld [vmem:[%s0 + $0x24] sm:$0xf]
    %v38 = vld [vmem:[%s0 + $0x28] sm:$0xf]
    %v39 = vld [vmem:[%s0 + $0x2c] sm:$0xf]
    %v40 = vld [vmem:[%s0 + $0x30] sm:$0xf]
    %v41 = vld [vmem:[%s0 + $0x34] sm:$0xf]
    %v42 = vld [vmem:[%s0 + $0x38] sm:$0xf]
    %v43 = vld [vmem:[%s0 + $0x3c] sm:$0xf]
    %v44 = vld [vmem:[%s0 + $0x40] sm:$0xf]
    %v45 = vld [vmem:[%s0 + $0x44] sm:$0xf]
    %v46 = vld [vmem:[%s0 + $0x48] sm:$0xf]
    %v47 = vld [vmem:[%s0 + $0x4c] sm:$0xf]
    %v48 = vld [vmem:[%s0 + $0x50] sm:$0xf]
    %v49 = vld [vmem:[%s0 + $0x54] sm:$0xf]
    %v50 = vld [vmem:[%s0 + $0x58] sm:$0xf]
    %v51 = vld [vmem:[%s0 + $0x5c] sm:$0xf]
    %v52 = vld [vmem:[%s1] sm:$0xf]
    %v53 = vld [vmem:[%s1 + $0x4] sm:$0xf]
    %v54 = vld [vmem:[%s1 + $0x8] sm:$0xf]
    %v55 = vld [vmem:[%s1 + $0xc] sm:$0xf]
    %v56 = vld [vmem:[%s2] sm:$0xff]
    %v57 = vld [vmem:[%s2 + $0x8] sm:$0xff]
    %v58 = vld [vmem:[%s2 + $0x10] sm:$0xff]
    %v59 = vld [vmem:[%s2 + $0x18] sm:$0xff]
    %61 = vset.pattern.permute.xlu0 0
    %62 = vperm.xlu0 %61, %v56
    %v63 = vpop.permute.xlu0 %62
    %66 = vset.pattern.permute.xlu0 0
    %67 = vperm.xlu0 %66, %v57
    %v68 = vpop.permute.xlu0 %67
    %71 = vset.pattern.permute.xlu0 0
    %72 = vperm.xlu0 %71, %v58
    %v73 = vpop.permute.xlu0 %72
    %76 = vset.pattern.permute.xlu0 0
    %77 = vperm.xlu0 %76, %v59
    %v78 = vpop.permute.xlu0 %77
    %v84 = vunpack.c.l.b16 %v52
    %v85 = vunpack.c.l.b16 %v53
    %v86 = vunpack.c.l.b16 %v54
    %v87 = vunpack.c.l.b16 %v55
    %v88 = vpack.c.b16 %v85, %v84
    %v89 = vpack.c.b16 %v87, %v86
    %v98 = vunpack.c.l.b16 %v44
    %v99 = vunpack.c.l.b16 %v45
    %v100 = vunpack.c.l.b16 %v46
    %v101 = vunpack.c.l.b16 %v47
    %v102 = vunpack.c.l.b16 %v48
    %v103 = vunpack.c.l.b16 %v49
    %v104 = vunpack.c.l.b16 %v50
    %v105 = vunpack.c.l.b16 %v51
    %v106 = vpack.c.b16 %v99, %v98
    %v107 = vpack.c.b16 %v101, %v100
    %v108 = vpack.c.b16 %v103, %v102
    %v109 = vpack.c.b16 %v105, %v104
    %vm114 = vcmask 523264
    %v116 = vsel %vm114, %v88, 0
    %v119 = vsel %vm114, %v89, 0
    %121 = vmatprep.subr.bf16.mxu0 0
    %122 = vmatpush1.bf16.msra.mxu0 %v106
    %123 = vmatprep.subr.bf16.mxu0 0
    %124 = vmatpush1.bf16.msra.mxu0 %v107
    %125 = vmatprep.subr.bf16.mxu0 0
    %126 = vmatpush1.bf16.msra.mxu0 %v108
    %127 = vmatprep.subr.bf16.mxu0 0
    %128 = vmatpush1.bf16.msra.mxu0 %v109
    %129 = vmatprep.subr.bf16.mxu0 0
    %130 = vmatpush1.bf16.msra.mxu0 0
    %131 = vmatprep.subr.bf16.mxu0 0
    %132 = vmatpush1.bf16.msra.mxu0 0
    %133 = vmatprep.subr.bf16.mxu0 0
    %134 = vmatpush1.bf16.msra.mxu0 0
    %135 = vmatprep.subr.bf16.mxu0 0
    %136 = vmatpush1.bf16.msra.mxu0 0
    %137 = vmatprep.subr.bf16.mxu0 0
    %138 = vmatpush1.bf16.msra.mxu0 0
    %139 = vmatprep.subr.bf16.mxu0 0
    %140 = vmatpush1.bf16.msra.mxu0 0
    %141 = vmatprep.subr.bf16.mxu0 0
    %142 = vmatpush1.bf16.msra.mxu0 0
    %143 = vmatprep.subr.bf16.mxu0 0
    %144 = vmatpush1.bf16.msra.mxu0 0
    %145 = vmatprep.subr.bf16.mxu0 0
    %146 = vmatpush1.bf16.msra.mxu0 0
    %147 = vmatprep.subr.bf16.mxu0 0
    %148 = vmatpush1.bf16.msra.mxu0 0
    %149 = vmatprep.subr.bf16.mxu0 0
    %150 = vmatpush1.bf16.msra.mxu0 0
    %151 = vmatprep.subr.bf16.mxu0 0
    %152 = vmatpush1.bf16.msra.mxu0 0
    %153 = vmatprep.mubr.bf16.mxu0 0
    %154 = vmatmul.mubr.bf16.gmra.mrb[0].mxu0 %v116
    %v155 = vpop.f32.mrb[0].mxu0
    %v156 = vadd.f32 %v63, %v155
    %v157 = vpop.f32.mrb[0].mxu0
    %v158 = vpop.f32.mrb[0].mxu0
    %v159 = vadd.f32 %v68, %v158
    %v160 = vpop.f32.mrb[0].mxu0
    %161 = vmatprep.mubr.bf16.mxu0 0
    %162 = vmatmul.mubr.bf16.gmra.mrb[0].mxu0 %v119
    %v163 = vpop.f32.mrb[0].mxu0
    %v164 = vadd.f32 %v73, %v163
    %v165 = vpop.f32.mrb[0].mxu0
    %v166 = vpop.f32.mrb[0].mxu0
    %v167 = vadd.f32 %v78, %v166
    %v168 = vpop.f32.mrb[0].mxu0
    %169 = vdwg.mxu0
    %v170 = vld [vmem:[%s3] sm:$0xf]
    %v171 = vld [vmem:[%s3 + $0x4] sm:$0xf]
    %v172 = vld [vmem:[%s3 + $0x8] sm:$0xf]
    %v173 = vld [vmem:[%s3 + $0xc] sm:$0xf]
    %v174 = vld [vmem:[%s3 + $0x10] sm:$0xf]
    %v175 = vld [vmem:[%s3 + $0x14] sm:$0xf]
    %v176 = vld [vmem:[%s3 + $0x18] sm:$0xf]
    %v177 = vld [vmem:[%s3 + $0x1c] sm:$0xf]
    %v178 = vld [vmem:[%s3 + $0x20] sm:$0xf]
    %v179 = vld [vmem:[%s3 + $0x24] sm:$0xf]
    %v180 = vld [vmem:[%s3 + $0x28] sm:$0xf]
    %v181 = vld [vmem:[%s3 + $0x2c] sm:$0xf]
    %v182 = vld [vmem:[%s3 + $0x30] sm:$0xf]
    %v183 = vld [vmem:[%s3 + $0x34] sm:$0xf]
    %v184 = vld [vmem:[%s3 + $0x38] sm:$0xf]
    %v185 = vld [vmem:[%s3 + $0x3c] sm:$0xf]
    %v186 = vld [vmem:[%s3 + $0x40] sm:$0xf]
    %v187 = vld [vmem:[%s3 + $0x44] sm:$0xf]
    %v188 = vld [vmem:[%s3 + $0x48] sm:$0xf]
    %v189 = vld [vmem:[%s3 + $0x4c] sm:$0xf]
    %v190 = vld [vmem:[%s3 + $0x50] sm:$0xf]
    %v191 = vld [vmem:[%s3 + $0x54] sm:$0xf]
    %v192 = vld [vmem:[%s3 + $0x58] sm:$0xf]
    %v193 = vld [vmem:[%s3 + $0x5c] sm:$0xf]
    %v194 = vld [vmem:[%s3 + $0x60] sm:$0xf]
    %v195 = vld [vmem:[%s3 + $0x64] sm:$0xf]
    %v196 = vld [vmem:[%s3 + $0x68] sm:$0xf]
    %v197 = vld [vmem:[%s3 + $0x6c] sm:$0xf]
    %v198 = vld [vmem:[%s3 + $0x70] sm:$0xf]
    %v199 = vld [vmem:[%s3 + $0x74] sm:$0xf]
    %v200 = vld [vmem:[%s3 + $0x78] sm:$0xf]
    %v201 = vld [vmem:[%s3 + $0x7c] sm:$0xf]
    %v202 = vld [vmem:[%s3 + $0x80] sm:$0xf]
    %v203 = vld [vmem:[%s3 + $0x84] sm:$0xf]
    %v204 = vld [vmem:[%s3 + $0x88] sm:$0xf]
    %v205 = vld [vmem:[%s3 + $0x8c] sm:$0xf]
    %v206 = vld [vmem:[%s3 + $0x90] sm:$0xf]
    %v207 = vld [vmem:[%s3 + $0x94] sm:$0xf]
    %v208 = vld [vmem:[%s3 + $0x98] sm:$0xf]
    %v209 = vld [vmem:[%s3 + $0x9c] sm:$0xf]
    %v210 = vld [vmem:[%s3 + $0xa0] sm:$0xf]
    %v211 = vld [vmem:[%s3 + $0xa4] sm:$0xf]
    %v212 = vld [vmem:[%s3 + $0xa8] sm:$0xf]
    %v213 = vld [vmem:[%s3 + $0xac] sm:$0xf]
    %v214 = vld [vmem:[%s3 + $0xb0] sm:$0xf]
    %v215 = vld [vmem:[%s3 + $0xb4] sm:$0xf]
    %v216 = vld [vmem:[%s3 + $0xb8] sm:$0xf]
    %v217 = vld [vmem:[%s3 + $0xbc] sm:$0xf]
    %v218 = vld [vmem:[%s3 + $0xc0] sm:$0xf]
    %v219 = vld [vmem:[%s3 + $0xc4] sm:$0xf]
    %v220 = vld [vmem:[%s3 + $0xc8] sm:$0xf]
    %v221 = vld [vmem:[%s3 + $0xcc] sm:$0xf]
    %v222 = vld [vmem:[%s3 + $0xd0] sm:$0xf]
    %v223 = vld [vmem:[%s3 + $0xd4] sm:$0xf]
    %v224 = vld [vmem:[%s3 + $0xd8] sm:$0xf]
    %v225 = vld [vmem:[%s3 + $0xdc] sm:$0xf]
    %v226 = vld [vmem:[%s3 + $0xe0] sm:$0xf]
    %v227 = vld [vmem:[%s3 + $0xe4] sm:$0xf]
    %v228 = vld [vmem:[%s3 + $0xe8] sm:$0xf]
    %v229 = vld [vmem:[%s3 + $0xec] sm:$0xf]
    %v230 = vld [vmem:[%s3 + $0xf0] sm:$0xf]
    %v231 = vld [vmem:[%s3 + $0xf4] sm:$0xf]
    %v232 = vld [vmem:[%s3 + $0xf8] sm:$0xf]
    %v233 = vld [vmem:[%s3 + $0xfc] sm:$0xf]
    %v234 = vld [vmem:[%s3 + $0x100] sm:$0xf]
    %v235 = vld [vmem:[%s3 + $0x104] sm:$0xf]
    %v236 = vld [vmem:[%s3 + $0x108] sm:$0xf]
    %v237 = vld [vmem:[%s3 + $0x10c] sm:$0xf]
    %v238 = vld [vmem:[%s3 + $0x110] sm:$0xf]
    %v239 = vld [vmem:[%s3 + $0x114] sm:$0xf]
    %v240 = vld [vmem:[%s3 + $0x118] sm:$0xf]
    %v241 = vld [vmem:[%s3 + $0x11c] sm:$0xf]
    %v242 = vld [vmem:[%s3 + $0x120] sm:$0xf]
    %v243 = vld [vmem:[%s3 + $0x124] sm:$0xf]
    %v244 = vld [vmem:[%s3 + $0x128] sm:$0xf]
    %v245 = vld [vmem:[%s3 + $0x12c] sm:$0xf]
    %v246 = vld [vmem:[%s3 + $0x130] sm:$0xf]
    %v247 = vld [vmem:[%s3 + $0x134] sm:$0xf]
    %v248 = vld [vmem:[%s3 + $0x138] sm:$0xf]
    %v249 = vld [vmem:[%s3 + $0x13c] sm:$0xf]
    %v250 = vld [vmem:[%s3 + $0x140] sm:$0xf]
    %v251 = vld [vmem:[%s3 + $0x144] sm:$0xf]
    %v252 = vld [vmem:[%s3 + $0x148] sm:$0xf]
    %v253 = vld [vmem:[%s3 + $0x14c] sm:$0xf]
    %v254 = vld [vmem:[%s3 + $0x150] sm:$0xf]
    %v255 = vld [vmem:[%s3 + $0x154] sm:$0xf]
    %v256 = vld [vmem:[%s3 + $0x158] sm:$0xf]
    %v257 = vld [vmem:[%s3 + $0x15c] sm:$0xf]
    %v258 = vld [vmem:[%s3 + $0x160] sm:$0xf]
    %v259 = vld [vmem:[%s3 + $0x164] sm:$0xf]
    %v260 = vld [vmem:[%s3 + $0x168] sm:$0xf]
    %v261 = vld [vmem:[%s3 + $0x16c] sm:$0xf]
    %v262 = vld [vmem:[%s3 + $0x170] sm:$0xf]
    %v263 = vld [vmem:[%s3 + $0x174] sm:$0xf]
    %v264 = vld [vmem:[%s3 + $0x178] sm:$0xf]
    %v265 = vld [vmem:[%s3 + $0x17c] sm:$0xf]
    %v266 = vld [vmem:[%s3 + $0x180] sm:$0xf]
    %v267 = vld [vmem:[%s3 + $0x184] sm:$0xf]
    %v268 = vld [vmem:[%s3 + $0x188] sm:$0xf]
    %v269 = vld [vmem:[%s3 + $0x18c] sm:$0xf]
    %v270 = vld [vmem:[%s3 + $0x190] sm:$0xf]
    %v271 = vld [vmem:[%s3 + $0x194] sm:$0xf]
    %v272 = vld [vmem:[%s3 + $0x198] sm:$0xf]
    %v273 = vld [vmem:[%s3 + $0x19c] sm:$0xf]
    %v274 = vld [vmem:[%s3 + $0x1a0] sm:$0xf]
    %v275 = vld [vmem:[%s3 + $0x1a4] sm:$0xf]
    %v276 = vld [vmem:[%s3 + $0x1a8] sm:$0xf]
    %v277 = vld [vmem:[%s3 + $0x1ac] sm:$0xf]
    %v278 = vld [vmem:[%s3 + $0x1b0] sm:$0xf]
    %v279 = vld [vmem:[%s3 + $0x1b4] sm:$0xf]
    %v280 = vld [vmem:[%s3 + $0x1b8] sm:$0xf]
    %v281 = vld [vmem:[%s3 + $0x1bc] sm:$0xf]
    %v282 = vld [vmem:[%s3 + $0x1c0] sm:$0xf]
    %v283 = vld [vmem:[%s3 + $0x1c4] sm:$0xf]
    %v284 = vld [vmem:[%s3 + $0x1c8] sm:$0xf]
    %v285 = vld [vmem:[%s3 + $0x1cc] sm:$0xf]
    %v286 = vld [vmem:[%s3 + $0x1d0] sm:$0xf]
    %v287 = vld [vmem:[%s3 + $0x1d4] sm:$0xf]
    %v288 = vld [vmem:[%s3 + $0x1d8] sm:$0xf]
    %v289 = vld [vmem:[%s3 + $0x1dc] sm:$0xf]
    %v290 = vld [vmem:[%s3 + $0x1e0] sm:$0xf]
    %v291 = vld [vmem:[%s3 + $0x1e4] sm:$0xf]
    %v292 = vld [vmem:[%s3 + $0x1e8] sm:$0xf]
    %v293 = vld [vmem:[%s3 + $0x1ec] sm:$0xf]
    %v294 = vld [vmem:[%s3 + $0x1f0] sm:$0xf]
    %v295 = vld [vmem:[%s3 + $0x1f4] sm:$0xf]
    %v296 = vld [vmem:[%s3 + $0x1f8] sm:$0xf]
    %v297 = vld [vmem:[%s3 + $0x1fc] sm:$0xf]
    %v298 = vld [vmem:[%s3 + $0x200] sm:$0xf]
    %v299 = vld [vmem:[%s3 + $0x204] sm:$0xf]
    %v300 = vld [vmem:[%s3 + $0x208] sm:$0xf]
    %v301 = vld [vmem:[%s3 + $0x20c] sm:$0xf]
    %v302 = vld [vmem:[%s3 + $0x210] sm:$0xf]
    %v303 = vld [vmem:[%s3 + $0x214] sm:$0xf]
    %v304 = vld [vmem:[%s3 + $0x218] sm:$0xf]
    %v305 = vld [vmem:[%s3 + $0x21c] sm:$0xf]
    %v306 = vld [vmem:[%s3 + $0x220] sm:$0xf]
    %v307 = vld [vmem:[%s3 + $0x224] sm:$0xf]
    %v308 = vld [vmem:[%s3 + $0x228] sm:$0xf]
    %v309 = vld [vmem:[%s3 + $0x22c] sm:$0xf]
    %v310 = vld [vmem:[%s3 + $0x230] sm:$0xf]
    %v311 = vld [vmem:[%s3 + $0x234] sm:$0xf]
    %v312 = vld [vmem:[%s3 + $0x238] sm:$0xf]
    %v313 = vld [vmem:[%s3 + $0x23c] sm:$0xf]
    %v314 = vld [vmem:[%s4] sm:$0xff]
    %v315 = vld [vmem:[%s4 + $0x8] sm:$0xff]
    %v316 = vld [vmem:[%s4 + $0x10] sm:$0xff]
    %v317 = vld [vmem:[%s4 + $0x18] sm:$0xff]
    %v318 = vld [vmem:[%s4 + $0x20] sm:$0xff]
    %v319 = vld [vmem:[%s4 + $0x28] sm:$0xff]
    %v320 = vld [vmem:[%s4 + $0x30] sm:$0xff]
    %v321 = vld [vmem:[%s4 + $0x38] sm:$0xff]
    %v322 = vld [vmem:[%s4 + $0x40] sm:$0xff]
    %v323 = vld [vmem:[%s4 + $0x48] sm:$0xff]
    %v324 = vld [vmem:[%s4 + $0x50] sm:$0xff]
    %v325 = vld [vmem:[%s4 + $0x58] sm:$0xff]
    %v326 = vld [vmem:[%s4 + $0x60] sm:$0xff]
    %v327 = vld [vmem:[%s4 + $0x68] sm:$0xff]
    %v328 = vld [vmem:[%s4 + $0x70] sm:$0xff]
    %v329 = vld [vmem:[%s4 + $0x78] sm:$0xff]
    %v330 = vld [vmem:[%s4 + $0x80] sm:$0xff]
    %v331 = vld [vmem:[%s4 + $0x88] sm:$0xff]
    %v332 = vld [vmem:[%s4 + $0x90] sm:$0xff]
    %v333 = vld [vmem:[%s4 + $0x98] sm:$0xff]
    %v334 = vld [vmem:[%s4 + $0xa0] sm:$0xff]
    %v335 = vld [vmem:[%s4 + $0xa8] sm:$0xff]
    %v336 = vld [vmem:[%s4 + $0xb0] sm:$0xff]
    %v337 = vld [vmem:[%s4 + $0xb8] sm:$0xff]
    %v338 = vld [vmem:[%s4 + $0xc0] sm:$0xff]
    %v339 = vld [vmem:[%s4 + $0xc8] sm:$0xff]
    %v340 = vld [vmem:[%s4 + $0xd0] sm:$0xff]
    %v341 = vld [vmem:[%s4 + $0xd8] sm:$0xff]
    %v342 = vld [vmem:[%s4 + $0xe0] sm:$0xff]
    %v343 = vld [vmem:[%s4 + $0xe8] sm:$0xff]
    %v344 = vld [vmem:[%s4 + $0xf0] sm:$0xff]
    %v345 = vld [vmem:[%s4 + $0xf8] sm:$0xff]
    %v346 = vld [vmem:[%s4 + $0x100] sm:$0xff]
    %v347 = vld [vmem:[%s4 + $0x108] sm:$0xff]
    %v348 = vld [vmem:[%s4 + $0x110] sm:$0xff]
    %v349 = vld [vmem:[%s4 + $0x118] sm:$0xff]
    %v350 = vld [vmem:[%s4 + $0x120] sm:$0xff]
    %v351 = vld [vmem:[%s4 + $0x128] sm:$0xff]
    %v352 = vld [vmem:[%s4 + $0x130] sm:$0xff]
    %v353 = vld [vmem:[%s4 + $0x138] sm:$0xff]
    %v354 = vld [vmem:[%s4 + $0x140] sm:$0xff]
    %v355 = vld [vmem:[%s4 + $0x148] sm:$0xff]
    %v356 = vld [vmem:[%s4 + $0x150] sm:$0xff]
    %v357 = vld [vmem:[%s4 + $0x158] sm:$0xff]
    %v358 = vld [vmem:[%s4 + $0x160] sm:$0xff]
    %v359 = vld [vmem:[%s4 + $0x168] sm:$0xff]
    %v360 = vld [vmem:[%s4 + $0x170] sm:$0xff]
    %v361 = vld [vmem:[%s4 + $0x178] sm:$0xff]
    %v362 = vld [vmem:[%s4 + $0x180] sm:$0xff]
    %v363 = vld [vmem:[%s4 + $0x188] sm:$0xff]
    %v364 = vld [vmem:[%s4 + $0x190] sm:$0xff]
    %v365 = vld [vmem:[%s4 + $0x198] sm:$0xff]
    %v366 = vld [vmem:[%s4 + $0x1a0] sm:$0xff]
    %v367 = vld [vmem:[%s4 + $0x1a8] sm:$0xff]
    %v368 = vld [vmem:[%s4 + $0x1b0] sm:$0xff]
    %v369 = vld [vmem:[%s4 + $0x1b8] sm:$0xff]
    %v370 = vld [vmem:[%s4 + $0x1c0] sm:$0xff]
    %v371 = vld [vmem:[%s4 + $0x1c8] sm:$0xff]
    %v372 = vld [vmem:[%s4 + $0x1d0] sm:$0xff]
    %v373 = vld [vmem:[%s4 + $0x1d8] sm:$0xff]
    %v374 = vld [vmem:[%s4 + $0x1e0] sm:$0xff]
    %v375 = vld [vmem:[%s4 + $0x1e8] sm:$0xff]
    %v376 = vld [vmem:[%s4 + $0x1f0] sm:$0xff]
    %v377 = vld [vmem:[%s4 + $0x1f8] sm:$0xff]
    %v378 = vld [vmem:[%s4 + $0x200] sm:$0xff]
    %v379 = vld [vmem:[%s4 + $0x208] sm:$0xff]
    %v380 = vld [vmem:[%s4 + $0x210] sm:$0xff]
    %v381 = vld [vmem:[%s4 + $0x218] sm:$0xff]
    %v382 = vld [vmem:[%s4 + $0x220] sm:$0xff]
    %v383 = vld [vmem:[%s4 + $0x228] sm:$0xff]
    %v384 = vld [vmem:[%s4 + $0x230] sm:$0xff]
    %v385 = vld [vmem:[%s4 + $0x238] sm:$0xff]
    %v386 = vld [vmem:[%s4 + $0x240] sm:$0xff]
    %v387 = vld [vmem:[%s4 + $0x248] sm:$0xff]
    %v388 = vld [vmem:[%s4 + $0x250] sm:$0xff]
    %v389 = vld [vmem:[%s4 + $0x258] sm:$0xff]
    %v390 = vld [vmem:[%s4 + $0x260] sm:$0xff]
    %v391 = vld [vmem:[%s4 + $0x268] sm:$0xff]
    %v392 = vld [vmem:[%s4 + $0x270] sm:$0xff]
    %v393 = vld [vmem:[%s4 + $0x278] sm:$0xff]
    %v394 = vld [vmem:[%s4 + $0x280] sm:$0xff]
    %v395 = vld [vmem:[%s4 + $0x288] sm:$0xff]
    %v396 = vld [vmem:[%s4 + $0x290] sm:$0xff]
    %v397 = vld [vmem:[%s4 + $0x298] sm:$0xff]
    %v398 = vld [vmem:[%s4 + $0x2a0] sm:$0xff]
    %v399 = vld [vmem:[%s4 + $0x2a8] sm:$0xff]
    %v400 = vld [vmem:[%s4 + $0x2b0] sm:$0xff]
    %v401 = vld [vmem:[%s4 + $0x2b8] sm:$0xff]
    %v402 = vld [vmem:[%s4 + $0x2c0] sm:$0xff]
    %v403 = vld [vmem:[%s4 + $0x2c8] sm:$0xff]
    %v404 = vld [vmem:[%s4 + $0x2d0] sm:$0xff]
    %v405 = vld [vmem:[%s4 + $0x2d8] sm:$0xff]
    %v406 = vld [vmem:[%s4 + $0x2e0] sm:$0xff]
    %v407 = vld [vmem:[%s4 + $0x2e8] sm:$0xff]
    %v408 = vld [vmem:[%s4 + $0x2f0] sm:$0xff]
    %v409 = vld [vmem:[%s4 + $0x2f8] sm:$0xff]
    %v410 = vld [vmem:[%s4 + $0x300] sm:$0xff]
    %v411 = vld [vmem:[%s4 + $0x308] sm:$0xff]
    %v412 = vld [vmem:[%s4 + $0x310] sm:$0xff]
    %v413 = vld [vmem:[%s4 + $0x318] sm:$0xff]
    %v414 = vld [vmem:[%s4 + $0x320] sm:$0xff]
    %v415 = vld [vmem:[%s4 + $0x328] sm:$0xff]
    %v416 = vld [vmem:[%s4 + $0x330] sm:$0xff]
    %v417 = vld [vmem:[%s4 + $0x338] sm:$0xff]
    %v418 = vld [vmem:[%s4 + $0x340] sm:$0xff]
    %v419 = vld [vmem:[%s4 + $0x348] sm:$0xff]
    %v420 = vld [vmem:[%s4 + $0x350] sm:$0xff]
    %v421 = vld [vmem:[%s4 + $0x358] sm:$0xff]
    %v422 = vld [vmem:[%s4 + $0x360] sm:$0xff]
    %v423 = vld [vmem:[%s4 + $0x368] sm:$0xff]
    %v424 = vld [vmem:[%s4 + $0x370] sm:$0xff]
    %v425 = vld [vmem:[%s4 + $0x378] sm:$0xff]
    %v426 = vld [vmem:[%s4 + $0x380] sm:$0xff]
    %v427 = vld [vmem:[%s4 + $0x388] sm:$0xff]
    %v428 = vld [vmem:[%s4 + $0x390] sm:$0xff]
    %v429 = vld [vmem:[%s4 + $0x398] sm:$0xff]
    %v430 = vld [vmem:[%s4 + $0x3a0] sm:$0xff]
    %v431 = vld [vmem:[%s4 + $0x3a8] sm:$0xff]
    %v432 = vld [vmem:[%s4 + $0x3b0] sm:$0xff]
    %v433 = vld [vmem:[%s4 + $0x3b8] sm:$0xff]
    %v434 = vld [vmem:[%s4 + $0x3c0] sm:$0xff]
    %v435 = vld [vmem:[%s4 + $0x3c8] sm:$0xff]
    %v436 = vld [vmem:[%s4 + $0x3d0] sm:$0xff]
    %v437 = vld [vmem:[%s4 + $0x3d8] sm:$0xff]
    %v438 = vld [vmem:[%s4 + $0x3e0] sm:$0xff]
    %v439 = vld [vmem:[%s4 + $0x3e8] sm:$0xff]
    %v440 = vld [vmem:[%s4 + $0x3f0] sm:$0xff]
    %v441 = vld [vmem:[%s4 + $0x3f8] sm:$0xff]
    %v442 = vld [vmem:[%s4 + $0x400] sm:$0xff]
    %v443 = vld [vmem:[%s4 + $0x408] sm:$0xff]
    %v444 = vld [vmem:[%s4 + $0x410] sm:$0xff]
    %v445 = vld [vmem:[%s4 + $0x418] sm:$0xff]
    %v446 = vld [vmem:[%s4 + $0x420] sm:$0xff]
    %v447 = vld [vmem:[%s4 + $0x428] sm:$0xff]
    %v448 = vld [vmem:[%s4 + $0x430] sm:$0xff]
    %v449 = vld [vmem:[%s4 + $0x438] sm:$0xff]
    %v450 = vld [vmem:[%s4 + $0x440] sm:$0xff]
    %v451 = vld [vmem:[%s4 + $0x448] sm:$0xff]
    %v452 = vld [vmem:[%s4 + $0x450] sm:$0xff]
    %v453 = vld [vmem:[%s4 + $0x458] sm:$0xff]
    %v454 = vld [vmem:[%s4 + $0x460] sm:$0xff]
    %v455 = vld [vmem:[%s4 + $0x468] sm:$0xff]
    %v456 = vld [vmem:[%s4 + $0x470] sm:$0xff]
    %v457 = vld [vmem:[%s4 + $0x478] sm:$0xff]
    %459 = vset.pattern.permute.xlu0 0
    %460 = vperm.xlu0 %459, %v314
    %v461 = vpop.permute.xlu0 %460
    %464 = vset.pattern.permute.xlu0 0
    %465 = vperm.xlu0 %464, %v315
    %v466 = vpop.permute.xlu0 %465
    %469 = vset.pattern.permute.xlu0 0
    %470 = vperm.xlu0 %469, %v316
    %v471 = vpop.permute.xlu0 %470
    %474 = vset.pattern.permute.xlu0 0
    %475 = vperm.xlu0 %474, %v317
    %v476 = vpop.permute.xlu0 %475
    %479 = vset.pattern.permute.xlu0 0
    %480 = vperm.xlu0 %479, %v318
    %v481 = vpop.permute.xlu0 %480
    %484 = vset.pattern.permute.xlu0 0
    %485 = vperm.xlu0 %484, %v319
    %v486 = vpop.permute.xlu0 %485
    %489 = vset.pattern.permute.xlu0 0
    %490 = vperm.xlu0 %489, %v320
    %v491 = vpop.permute.xlu0 %490
    %494 = vset.pattern.permute.xlu0 0
    %495 = vperm.xlu0 %494, %v321
    %v496 = vpop.permute.xlu0 %495
    %499 = vset.pattern.permute.xlu0 0
    %500 = vperm.xlu0 %499, %v322
    %v501 = vpop.permute.xlu0 %500
    %504 = vset.pattern.permute.xlu0 0
    %505 = vperm.xlu0 %504, %v323
    %v506 = vpop.permute.xlu0 %505
    %509 = vset.pattern.permute.xlu0 0
    %510 = vperm.xlu0 %509, %v324
    %v511 = vpop.permute.xlu0 %510
    %514 = vset.pattern.permute.xlu0 0
    %515 = vperm.xlu0 %514, %v325
    %v516 = vpop.permute.xlu0 %515
    %519 = vset.pattern.permute.xlu0 0
    %520 = vperm.xlu0 %519, %v326
    %v521 = vpop.permute.xlu0 %520
    %524 = vset.pattern.permute.xlu0 0
    %525 = vperm.xlu0 %524, %v327
    %v526 = vpop.permute.xlu0 %525
    %529 = vset.pattern.permute.xlu0 0
    %530 = vperm.xlu0 %529, %v328
    %v531 = vpop.permute.xlu0 %530
    %534 = vset.pattern.permute.xlu0 0
    %535 = vperm.xlu0 %534, %v329
    %v536 = vpop.permute.xlu0 %535
    %539 = vset.pattern.permute.xlu0 0
    %540 = vperm.xlu0 %539, %v330
    %v541 = vpop.permute.xlu0 %540
    %544 = vset.pattern.permute.xlu0 0
    %545 = vperm.xlu0 %544, %v331
    %v546 = vpop.permute.xlu0 %545
    %549 = vset.pattern.permute.xlu0 0
    %550 = vperm.xlu0 %549, %v332
    %v551 = vpop.permute.xlu0 %550
    %554 = vset.pattern.permute.xlu0 0
    %555 = vperm.xlu0 %554, %v333
    %v556 = vpop.permute.xlu0 %555
    %559 = vset.pattern.permute.xlu0 0
    %560 = vperm.xlu0 %559, %v334
    %v561 = vpop.permute.xlu0 %560
    %564 = vset.pattern.permute.xlu0 0
    %565 = vperm.xlu0 %564, %v335
    %v566 = vpop.permute.xlu0 %565
    %569 = vset.pattern.permute.xlu0 0
    %570 = vperm.xlu0 %569, %v336
    %v571 = vpop.permute.xlu0 %570
    %574 = vset.pattern.permute.xlu0 0
    %575 = vperm.xlu0 %574, %v337
    %v576 = vpop.permute.xlu0 %575
    %579 = vset.pattern.permute.xlu0 0
    %580 = vperm.xlu0 %579, %v338
    %v581 = vpop.permute.xlu0 %580
    %584 = vset.pattern.permute.xlu0 0
    %585 = vperm.xlu0 %584, %v339
    %v586 = vpop.permute.xlu0 %585
    %589 = vset.pattern.permute.xlu0 0
    %590 = vperm.xlu0 %589, %v340
    %v591 = vpop.permute.xlu0 %590
    %594 = vset.pattern.permute.xlu0 0
    %595 = vperm.xlu0 %594, %v341
    %v596 = vpop.permute.xlu0 %595
    %599 = vset.pattern.permute.xlu0 0
    %600 = vperm.xlu0 %599, %v342
    %v601 = vpop.permute.xlu0 %600
    %604 = vset.pattern.permute.xlu0 0
    %605 = vperm.xlu0 %604, %v343
    %v606 = vpop.permute.xlu0 %605
    %609 = vset.pattern.permute.xlu0 0
    %610 = vperm.xlu0 %609, %v344
    %v611 = vpop.permute.xlu0 %610
    %614 = vset.pattern.permute.xlu0 0
    %615 = vperm.xlu0 %614, %v345
    %v616 = vpop.permute.xlu0 %615
    %619 = vset.pattern.permute.xlu0 0
    %620 = vperm.xlu0 %619, %v346
    %v621 = vpop.permute.xlu0 %620
    %624 = vset.pattern.permute.xlu0 0
    %625 = vperm.xlu0 %624, %v347
    %v626 = vpop.permute.xlu0 %625
    %629 = vset.pattern.permute.xlu0 0
    %630 = vperm.xlu0 %629, %v348
    %v631 = vpop.permute.xlu0 %630
    %634 = vset.pattern.permute.xlu0 0
    %635 = vperm.xlu0 %634, %v349
    %v636 = vpop.permute.xlu0 %635
    %639 = vset.pattern.permute.xlu0 0
    %640 = vperm.xlu0 %639, %v350
    %v641 = vpop.permute.xlu0 %640
    %644 = vset.pattern.permute.xlu0 0
    %645 = vperm.xlu0 %644, %v351
    %v646 = vpop.permute.xlu0 %645
    %649 = vset.pattern.permute.xlu0 0
    %650 = vperm.xlu0 %649, %v352
    %v651 = vpop.permute.xlu0 %650
    %654 = vset.pattern.permute.xlu0 0
    %655 = vperm.xlu0 %654, %v353
    %v656 = vpop.permute.xlu0 %655
    %659 = vset.pattern.permute.xlu0 0
    %660 = vperm.xlu0 %659, %v354
    %v661 = vpop.permute.xlu0 %660
    %664 = vset.pattern.permute.xlu0 0
    %665 = vperm.xlu0 %664, %v355
    %v666 = vpop.permute.xlu0 %665
    %669 = vset.pattern.permute.xlu0 0
    %670 = vperm.xlu0 %669, %v356
    %v671 = vpop.permute.xlu0 %670
    %674 = vset.pattern.permute.xlu0 0
    %675 = vperm.xlu0 %674, %v357
    %v676 = vpop.permute.xlu0 %675
    %679 = vset.pattern.permute.xlu0 0
    %680 = vperm.xlu0 %679, %v358
    %v681 = vpop.permute.xlu0 %680
    %684 = vset.pattern.permute.xlu0 0
    %685 = vperm.xlu0 %684, %v359
    %v686 = vpop.permute.xlu0 %685
    %689 = vset.pattern.permute.xlu0 0
    %690 = vperm.xlu0 %689, %v360
    %v691 = vpop.permute.xlu0 %690
    %694 = vset.pattern.permute.xlu0 0
    %695 = vperm.xlu0 %694, %v361
    %v696 = vpop.permute.xlu0 %695
    %699 = vset.pattern.permute.xlu0 0
    %700 = vperm.xlu0 %699, %v362
    %v701 = vpop.permute.xlu0 %700
    %704 = vset.pattern.permute.xlu0 0
    %705 = vperm.xlu0 %704, %v363
    %v706 = vpop.permute.xlu0 %705
    %709 = vset.pattern.permute.xlu0 0
    %710 = vperm.xlu0 %709, %v364
    %v711 = vpop.permute.xlu0 %710
    %714 = vset.pattern.permute.xlu0 0
    %715 = vperm.xlu0 %714, %v365
    %v716 = vpop.permute.xlu0 %715
    %719 = vset.pattern.permute.xlu0 0
    %720 = vperm.xlu0 %719, %v366
    %v721 = vpop.permute.xlu0 %720
    %724 = vset.pattern.permute.xlu0 0
    %725 = vperm.xlu0 %724, %v367
    %v726 = vpop.permute.xlu0 %725
    %729 = vset.pattern.permute.xlu0 0
    %730 = vperm.xlu0 %729, %v368
    %v731 = vpop.permute.xlu0 %730
    %734 = vset.pattern.permute.xlu0 0
    %735 = vperm.xlu0 %734, %v369
    %v736 = vpop.permute.xlu0 %735
    %739 = vset.pattern.permute.xlu0 0
    %740 = vperm.xlu0 %739, %v370
    %v741 = vpop.permute.xlu0 %740
    %744 = vset.pattern.permute.xlu0 0
    %745 = vperm.xlu0 %744, %v371
    %v746 = vpop.permute.xlu0 %745
    %749 = vset.pattern.permute.xlu0 0
    %750 = vperm.xlu0 %749, %v372
    %v751 = vpop.permute.xlu0 %750
    %754 = vset.pattern.permute.xlu0 0
    %755 = vperm.xlu0 %754, %v373
    %v756 = vpop.permute.xlu0 %755
    %759 = vset.pattern.permute.xlu0 0
    %760 = vperm.xlu0 %759, %v374
    %v761 = vpop.permute.xlu0 %760
    %764 = vset.pattern.permute.xlu0 0
    %765 = vperm.xlu0 %764, %v375
    %v766 = vpop.permute.xlu0 %765
    %769 = vset.pattern.permute.xlu0 0
    %770 = vperm.xlu0 %769, %v376
    %v771 = vpop.permute.xlu0 %770
    %774 = vset.pattern.permute.xlu0 0
    %775 = vperm.xlu0 %774, %v377
    %v776 = vpop.permute.xlu0 %775
    %779 = vset.pattern.permute.xlu0 0
    %780 = vperm.xlu0 %779, %v378
    %v781 = vpop.permute.xlu0 %780
    %784 = vset.pattern.permute.xlu0 0
    %785 = vperm.xlu0 %784, %v379
    %v786 = vpop.permute.xlu0 %785
    %789 = vset.pattern.permute.xlu0 0
    %790 = vperm.xlu0 %789, %v380
    %v791 = vpop.permute.xlu0 %790
    %794 = vset.pattern.permute.xlu0 0
    %795 = vperm.xlu0 %794, %v381
    %v796 = vpop.permute.xlu0 %795
    %799 = vset.pattern.permute.xlu0 0
    %800 = vperm.xlu0 %799, %v382
    %v801 = vpop.permute.xlu0 %800
    %804 = vset.pattern.permute.xlu0 0
    %805 = vperm.xlu0 %804, %v383
    %v806 = vpop.permute.xlu0 %805
    %809 = vset.pattern.permute.xlu0 0
    %810 = vperm.xlu0 %809, %v384
    %v811 = vpop.permute.xlu0 %810
    %814 = vset.pattern.permute.xlu0 0
    %815 = vperm.xlu0 %814, %v385
    %v816 = vpop.permute.xlu0 %815
    %819 = vset.pattern.permute.xlu0 0
    %820 = vperm.xlu0 %819, %v386
    %v821 = vpop.permute.xlu0 %820
    %824 = vset.pattern.permute.xlu0 0
    %825 = vperm.xlu0 %824, %v387
    %v826 = vpop.permute.xlu0 %825
    %829 = vset.pattern.permute.xlu0 0
    %830 = vperm.xlu0 %829, %v388
    %v831 = vpop.permute.xlu0 %830
    %834 = vset.pattern.permute.xlu0 0
    %835 = vperm.xlu0 %834, %v389
    %v836 = vpop.permute.xlu0 %835
    %839 = vset.pattern.permute.xlu0 0
    %840 = vperm.xlu0 %839, %v390
    %v841 = vpop.permute.xlu0 %840
    %844 = vset.pattern.permute.xlu0 0
    %845 = vperm.xlu0 %844, %v391
    %v846 = vpop.permute.xlu0 %845
    %849 = vset.pattern.permute.xlu0 0
    %850 = vperm.xlu0 %849, %v392
    %v851 = vpop.permute.xlu0 %850
    %854 = vset.pattern.permute.xlu0 0
    %855 = vperm.xlu0 %854, %v393
    %v856 = vpop.permute.xlu0 %855
    %859 = vset.pattern.permute.xlu0 0
    %860 = vperm.xlu0 %859, %v394
    %v861 = vpop.permute.xlu0 %860
    %864 = vset.pattern.permute.xlu0 0
    %865 = vperm.xlu0 %864, %v395
    %v866 = vpop.permute.xlu0 %865
    %869 = vset.pattern.permute.xlu0 0
    %870 = vperm.xlu0 %869, %v396
    %v871 = vpop.permute.xlu0 %870
    %874 = vset.pattern.permute.xlu0 0
    %875 = vperm.xlu0 %874, %v397
    %v876 = vpop.permute.xlu0 %875
    %879 = vset.pattern.permute.xlu0 0
    %880 = vperm.xlu0 %879, %v398
    %v881 = vpop.permute.xlu0 %880
    %884 = vset.pattern.permute.xlu0 0
    %885 = vperm.xlu0 %884, %v399
    %v886 = vpop.permute.xlu0 %885
    %889 = vset.pattern.permute.xlu0 0
    %890 = vperm.xlu0 %889, %v400
    %v891 = vpop.permute.xlu0 %890
    %894 = vset.pattern.permute.xlu0 0
    %895 = vperm.xlu0 %894, %v401
    %v896 = vpop.permute.xlu0 %895
    %899 = vset.pattern.permute.xlu0 0
    %900 = vperm.xlu0 %899, %v402
    %v901 = vpop.permute.xlu0 %900
    %904 = vset.pattern.permute.xlu0 0
    %905 = vperm.xlu0 %904, %v403
    %v906 = vpop.permute.xlu0 %905
    %909 = vset.pattern.permute.xlu0 0
    %910 = vperm.xlu0 %909, %v404
    %v911 = vpop.permute.xlu0 %910
    %914 = vset.pattern.permute.xlu0 0
    %915 = vperm.xlu0 %914, %v405
    %v916 = vpop.permute.xlu0 %915
    %919 = vset.pattern.permute.xlu0 0
    %920 = vperm.xlu0 %919, %v406
    %v921 = vpop.permute.xlu0 %920
    %924 = vset.pattern.permute.xlu0 0
    %925 = vperm.xlu0 %924, %v407
    %v926 = vpop.permute.xlu0 %925
    %929 = vset.pattern.permute.xlu0 0
    %930 = vperm.xlu0 %929, %v408
    %v931 = vpop.permute.xlu0 %930
    %934 = vset.pattern.permute.xlu0 0
    %935 = vperm.xlu0 %934, %v409
    %v936 = vpop.permute.xlu0 %935
    %939 = vset.pattern.permute.xlu0 0
    %940 = vperm.xlu0 %939, %v410
    %v941 = vpop.permute.xlu0 %940
    %944 = vset.pattern.permute.xlu0 0
    %945 = vperm.xlu0 %944, %v411
    %v946 = vpop.permute.xlu0 %945
    %949 = vset.pattern.permute.xlu0 0
    %950 = vperm.xlu0 %949, %v412
    %v951 = vpop.permute.xlu0 %950
    %954 = vset.pattern.permute.xlu0 0
    %955 = vperm.xlu0 %954, %v413
    %v956 = vpop.permute.xlu0 %955
    %959 = vset.pattern.permute.xlu0 0
    %960 = vperm.xlu0 %959, %v414
    %v961 = vpop.permute.xlu0 %960
    %964 = vset.pattern.permute.xlu0 0
    %965 = vperm.xlu0 %964, %v415
    %v966 = vpop.permute.xlu0 %965
    %969 = vset.pattern.permute.xlu0 0
    %970 = vperm.xlu0 %969, %v416
    %v971 = vpop.permute.xlu0 %970
    %974 = vset.pattern.permute.xlu0 0
    %975 = vperm.xlu0 %974, %v417
    %v976 = vpop.permute.xlu0 %975
    %979 = vset.pattern.permute.xlu0 0
    %980 = vperm.xlu0 %979, %v418
    %v981 = vpop.permute.xlu0 %980
    %984 = vset.pattern.permute.xlu0 0
    %985 = vperm.xlu0 %984, %v419
    %v986 = vpop.permute.xlu0 %985
    %989 = vset.pattern.permute.xlu0 0
    %990 = vperm.xlu0 %989, %v420
    %v991 = vpop.permute.xlu0 %990
    %994 = vset.pattern.permute.xlu0 0
    %995 = vperm.xlu0 %994, %v421
    %v996 = vpop.permute.xlu0 %995
    %999 = vset.pattern.permute.xlu0 0
    %1000 = vperm.xlu0 %999, %v422
    %v1001 = vpop.permute.xlu0 %1000
    %1004 = vset.pattern.permute.xlu0 0
    %1005 = vperm.xlu0 %1004, %v423
    %v1006 = vpop.permute.xlu0 %1005
    %1009 = vset.pattern.permute.xlu0 0
    %1010 = vperm.xlu0 %1009, %v424
    %v1011 = vpop.permute.xlu0 %1010
    %1014 = vset.pattern.permute.xlu0 0
    %1015 = vperm.xlu0 %1014, %v425
    %v1016 = vpop.permute.xlu0 %1015
    %1019 = vset.pattern.permute.xlu0 0
    %1020 = vperm.xlu0 %1019, %v426
    %v1021 = vpop.permute.xlu0 %1020
    %1024 = vset.pattern.permute.xlu0 0
    %1025 = vperm.xlu0 %1024, %v427
    %v1026 = vpop.permute.xlu0 %1025
    %1029 = vset.pattern.permute.xlu0 0
    %1030 = vperm.xlu0 %1029, %v428
    %v1031 = vpop.permute.xlu0 %1030
    %1034 = vset.pattern.permute.xlu0 0
    %1035 = vperm.xlu0 %1034, %v429
    %v1036 = vpop.permute.xlu0 %1035
    %1039 = vset.pattern.permute.xlu0 0
    %1040 = vperm.xlu0 %1039, %v430
    %v1041 = vpop.permute.xlu0 %1040
    %1044 = vset.pattern.permute.xlu0 0
    %1045 = vperm.xlu0 %1044, %v431
    %v1046 = vpop.permute.xlu0 %1045
    %1049 = vset.pattern.permute.xlu0 0
    %1050 = vperm.xlu0 %1049, %v432
    %v1051 = vpop.permute.xlu0 %1050
    %1054 = vset.pattern.permute.xlu0 0
    %1055 = vperm.xlu0 %1054, %v433
    %v1056 = vpop.permute.xlu0 %1055
    %1059 = vset.pattern.permute.xlu0 0
    %1060 = vperm.xlu0 %1059, %v434
    %v1061 = vpop.permute.xlu0 %1060
    %1064 = vset.pattern.permute.xlu0 0
    %1065 = vperm.xlu0 %1064, %v435
    %v1066 = vpop.permute.xlu0 %1065
    %1069 = vset.pattern.permute.xlu0 0
    %1070 = vperm.xlu0 %1069, %v436
    %v1071 = vpop.permute.xlu0 %1070
    %1074 = vset.pattern.permute.xlu0 0
    %1075 = vperm.xlu0 %1074, %v437
    %v1076 = vpop.permute.xlu0 %1075
    %1079 = vset.pattern.permute.xlu0 0
    %1080 = vperm.xlu0 %1079, %v438
    %v1081 = vpop.permute.xlu0 %1080
    %1084 = vset.pattern.permute.xlu0 0
    %1085 = vperm.xlu0 %1084, %v439
    %v1086 = vpop.permute.xlu0 %1085
    %1089 = vset.pattern.permute.xlu0 0
    %1090 = vperm.xlu0 %1089, %v440
    %v1091 = vpop.permute.xlu0 %1090
    %1094 = vset.pattern.permute.xlu0 0
    %1095 = vperm.xlu0 %1094, %v441
    %v1096 = vpop.permute.xlu0 %1095
    %1099 = vset.pattern.permute.xlu0 0
    %1100 = vperm.xlu0 %1099, %v442
    %v1101 = vpop.permute.xlu0 %1100
    %1104 = vset.pattern.permute.xlu0 0
    %1105 = vperm.xlu0 %1104, %v443
    %v1106 = vpop.permute.xlu0 %1105
    %1109 = vset.pattern.permute.xlu0 0
    %1110 = vperm.xlu0 %1109, %v444
    %v1111 = vpop.permute.xlu0 %1110
    %1114 = vset.pattern.permute.xlu0 0
    %1115 = vperm.xlu0 %1114, %v445
    %v1116 = vpop.permute.xlu0 %1115
    %1119 = vset.pattern.permute.xlu0 0
    %1120 = vperm.xlu0 %1119, %v446
    %v1121 = vpop.permute.xlu0 %1120
    %1124 = vset.pattern.permute.xlu0 0
    %1125 = vperm.xlu0 %1124, %v447
    %v1126 = vpop.permute.xlu0 %1125
    %1129 = vset.pattern.permute.xlu0 0
    %1130 = vperm.xlu0 %1129, %v448
    %v1131 = vpop.permute.xlu0 %1130
    %1134 = vset.pattern.permute.xlu0 0
    %1135 = vperm.xlu0 %1134, %v449
    %v1136 = vpop.permute.xlu0 %1135
    %1139 = vset.pattern.permute.xlu0 0
    %1140 = vperm.xlu0 %1139, %v450
    %v1141 = vpop.permute.xlu0 %1140
    %1144 = vset.pattern.permute.xlu0 0
    %1145 = vperm.xlu0 %1144, %v451
    %v1146 = vpop.permute.xlu0 %1145
    %1149 = vset.pattern.permute.xlu0 0
    %1150 = vperm.xlu0 %1149, %v452
    %v1151 = vpop.permute.xlu0 %1150
    %1154 = vset.pattern.permute.xlu0 0
    %1155 = vperm.xlu0 %1154, %v453
    %v1156 = vpop.permute.xlu0 %1155
    %1159 = vset.pattern.permute.xlu0 0
    %1160 = vperm.xlu0 %1159, %v454
    %v1161 = vpop.permute.xlu0 %1160
    %1164 = vset.pattern.permute.xlu0 0
    %1165 = vperm.xlu0 %1164, %v455
    %v1166 = vpop.permute.xlu0 %1165
    %1169 = vset.pattern.permute.xlu0 0
    %1170 = vperm.xlu0 %1169, %v456
    %v1171 = vpop.permute.xlu0 %1170
    %1174 = vset.pattern.permute.xlu0 0
    %1175 = vperm.xlu0 %1174, %v457
    %v1176 = vpop.permute.xlu0 %1175
    %v1322 = vunpack.c.l.b16 %v170
    %v1323 = vunpack.c.l.b16 %v171
    %v1324 = vunpack.c.l.b16 %v172
    %v1325 = vunpack.c.l.b16 %v173
    %v1326 = vunpack.c.l.b16 %v174
    %v1327 = vunpack.c.l.b16 %v175
    %v1328 = vunpack.c.l.b16 %v176
    %v1329 = vunpack.c.l.b16 %v177
    %v1330 = vunpack.c.l.b16 %v178
    %v1331 = vunpack.c.l.b16 %v179
    %v1332 = vunpack.c.l.b16 %v180
    %v1333 = vunpack.c.l.b16 %v181
    %v1334 = vunpack.c.l.b16 %v182
    %v1335 = vunpack.c.l.b16 %v183
    %v1336 = vunpack.c.l.b16 %v184
    %v1337 = vunpack.c.l.b16 %v185
    %v1338 = vunpack.c.l.b16 %v186
    %v1339 = vunpack.c.l.b16 %v187
    %v1340 = vunpack.c.l.b16 %v188
    %v1341 = vunpack.c.l.b16 %v189
    %v1342 = vunpack.c.l.b16 %v190
    %v1343 = vunpack.c.l.b16 %v191
    %v1344 = vunpack.c.l.b16 %v192
    %v1345 = vunpack.c.l.b16 %v193
    %v1346 = vunpack.c.l.b16 %v194
    %v1347 = vunpack.c.l.b16 %v195
    %v1348 = vunpack.c.l.b16 %v196
    %v1349 = vunpack.c.l.b16 %v197
    %v1350 = vunpack.c.l.b16 %v198
    %v1351 = vunpack.c.l.b16 %v199
    %v1352 = vunpack.c.l.b16 %v200
    %v1353 = vunpack.c.l.b16 %v201
    %v1354 = vunpack.c.l.b16 %v202
    %v1355 = vunpack.c.l.b16 %v203
    %v1356 = vunpack.c.l.b16 %v204
    %v1357 = vunpack.c.l.b16 %v205
    %v1358 = vunpack.c.l.b16 %v206
    %v1359 = vunpack.c.l.b16 %v207
    %v1360 = vunpack.c.l.b16 %v208
    %v1361 = vunpack.c.l.b16 %v209
    %v1362 = vunpack.c.l.b16 %v210
    %v1363 = vunpack.c.l.b16 %v211
    %v1364 = vunpack.c.l.b16 %v212
    %v1365 = vunpack.c.l.b16 %v213
    %v1366 = vunpack.c.l.b16 %v214
    %v1367 = vunpack.c.l.b16 %v215
    %v1368 = vunpack.c.l.b16 %v216
    %v1369 = vunpack.c.l.b16 %v217
    %v1370 = vunpack.c.l.b16 %v218
    %v1371 = vunpack.c.l.b16 %v219
    %v1372 = vunpack.c.l.b16 %v220
    %v1373 = vunpack.c.l.b16 %v221
    %v1374 = vunpack.c.l.b16 %v222
    %v1375 = vunpack.c.l.b16 %v223
    %v1376 = vunpack.c.l.b16 %v224
    %v1377 = vunpack.c.l.b16 %v225
    %v1378 = vunpack.c.l.b16 %v226
    %v1379 = vunpack.c.l.b16 %v227
    %v1380 = vunpack.c.l.b16 %v228
    %v1381 = vunpack.c.l.b16 %v229
    %v1382 = vunpack.c.l.b16 %v230
    %v1383 = vunpack.c.l.b16 %v231
    %v1384 = vunpack.c.l.b16 %v232
    %v1385 = vunpack.c.l.b16 %v233
    %v1386 = vunpack.c.l.b16 %v234
    %v1387 = vunpack.c.l.b16 %v235
    %v1388 = vunpack.c.l.b16 %v236
    %v1389 = vunpack.c.l.b16 %v237
    %v1390 = vunpack.c.l.b16 %v238
    %v1391 = vunpack.c.l.b16 %v239
    %v1392 = vunpack.c.l.b16 %v240
    %v1393 = vunpack.c.l.b16 %v241
    %v1394 = vunpack.c.l.b16 %v242
    %v1395 = vunpack.c.l.b16 %v243
    %v1396 = vunpack.c.l.b16 %v244
    %v1397 = vunpack.c.l.b16 %v245
    %v1398 = vunpack.c.l.b16 %v246
    %v1399 = vunpack.c.l.b16 %v247
    %v1400 = vunpack.c.l.b16 %v248
    %v1401 = vunpack.c.l.b16 %v249
    %v1402 = vunpack.c.l.b16 %v250
    %v1403 = vunpack.c.l.b16 %v251
    %v1404 = vunpack.c.l.b16 %v252
    %v1405 = vunpack.c.l.b16 %v253
    %v1406 = vunpack.c.l.b16 %v254
    %v1407 = vunpack.c.l.b16 %v255
    %v1408 = vunpack.c.l.b16 %v256
    %v1409 = vunpack.c.l.b16 %v257
    %v1410 = vunpack.c.l.b16 %v258
    %v1411 = vunpack.c.l.b16 %v259
    %v1412 = vunpack.c.l.b16 %v260
    %v1413 = vunpack.c.l.b16 %v261
    %v1414 = vunpack.c.l.b16 %v262
    %v1415 = vunpack.c.l.b16 %v263
    %v1416 = vunpack.c.l.b16 %v264
    %v1417 = vunpack.c.l.b16 %v265
    %v1418 = vunpack.c.l.b16 %v266
    %v1419 = vunpack.c.l.b16 %v267
    %v1420 = vunpack.c.l.b16 %v268
    %v1421 = vunpack.c.l.b16 %v269
    %v1422 = vunpack.c.l.b16 %v270
    %v1423 = vunpack.c.l.b16 %v271
    %v1424 = vunpack.c.l.b16 %v272
    %v1425 = vunpack.c.l.b16 %v273
    %v1426 = vunpack.c.l.b16 %v274
    %v1427 = vunpack.c.l.b16 %v275
    %v1428 = vunpack.c.l.b16 %v276
    %v1429 = vunpack.c.l.b16 %v277
    %v1430 = vunpack.c.l.b16 %v278
    %v1431 = vunpack.c.l.b16 %v279
    %v1432 = vunpack.c.l.b16 %v280
    %v1433 = vunpack.c.l.b16 %v281
    %v1434 = vunpack.c.l.b16 %v282
    %v1435 = vunpack.c.l.b16 %v283
    %v1436 = vunpack.c.l.b16 %v284
    %v1437 = vunpack.c.l.b16 %v285
    %v1438 = vunpack.c.l.b16 %v286
    %v1439 = vunpack.c.l.b16 %v287
    %v1440 = vunpack.c.l.b16 %v288
    %v1441 = vunpack.c.l.b16 %v289
    %v1442 = vunpack.c.l.b16 %v290
    %v1443 = vunpack.c.l.b16 %v291
    %v1444 = vunpack.c.l.b16 %v292
    %v1445 = vunpack.c.l.b16 %v293
    %v1446 = vunpack.c.l.b16 %v294
    %v1447 = vunpack.c.l.b16 %v295
    %v1448 = vunpack.c.l.b16 %v296
    %v1449 = vunpack.c.l.b16 %v297
    %v1450 = vunpack.c.l.b16 %v298
    %v1451 = vunpack.c.l.b16 %v299
    %v1452 = vunpack.c.l.b16 %v300
    %v1453 = vunpack.c.l.b16 %v301
    %v1454 = vunpack.c.l.b16 %v302
    %v1455 = vunpack.c.l.b16 %v303
    %v1456 = vunpack.c.l.b16 %v304
    %v1457 = vunpack.c.l.b16 %v305
    %v1458 = vunpack.c.l.b16 %v306
    %v1459 = vunpack.c.l.b16 %v307
    %v1460 = vunpack.c.l.b16 %v308
    %v1461 = vunpack.c.l.b16 %v309
    %v1462 = vunpack.c.l.b16 %v310
    %v1463 = vunpack.c.l.b16 %v311
    %v1464 = vunpack.c.l.b16 %v312
    %v1465 = vunpack.c.l.b16 %v313
    %v1466 = vpack.c.b16 %v1323, %v1322
    %v1467 = vpack.c.b16 %v1325, %v1324
    %v1468 = vpack.c.b16 %v1327, %v1326
    %v1469 = vpack.c.b16 %v1329, %v1328
    %v1470 = vpack.c.b16 %v1331, %v1330
    %v1471 = vpack.c.b16 %v1333, %v1332
    %v1472 = vpack.c.b16 %v1335, %v1334
    %v1473 = vpack.c.b16 %v1337, %v1336
    %v1474 = vpack.c.b16 %v1339, %v1338
    %v1475 = vpack.c.b16 %v1341, %v1340
    %v1476 = vpack.c.b16 %v1343, %v1342
    %v1477 = vpack.c.b16 %v1345, %v1344
    %v1478 = vpack.c.b16 %v1347, %v1346
    %v1479 = vpack.c.b16 %v1349, %v1348
    %v1480 = vpack.c.b16 %v1351, %v1350
    %v1481 = vpack.c.b16 %v1353, %v1352
    %v1482 = vpack.c.b16 %v1355, %v1354
    %v1483 = vpack.c.b16 %v1357, %v1356
    %v1484 = vpack.c.b16 %v1359, %v1358
    %v1485 = vpack.c.b16 %v1361, %v1360
    %v1486 = vpack.c.b16 %v1363, %v1362
    %v1487 = vpack.c.b16 %v1365, %v1364
    %v1488 = vpack.c.b16 %v1367, %v1366
    %v1489 = vpack.c.b16 %v1369, %v1368
    %v1490 = vpack.c.b16 %v1371, %v1370
    %v1491 = vpack.c.b16 %v1373, %v1372
    %v1492 = vpack.c.b16 %v1375, %v1374
    %v1493 = vpack.c.b16 %v1377, %v1376
    %v1494 = vpack.c.b16 %v1379, %v1378
    %v1495 = vpack.c.b16 %v1381, %v1380
    %v1496 = vpack.c.b16 %v1383, %v1382
    %v1497 = vpack.c.b16 %v1385, %v1384
    %v1498 = vpack.c.b16 %v1387, %v1386
    %v1499 = vpack.c.b16 %v1389, %v1388
    %v1500 = vpack.c.b16 %v1391, %v1390
    %v1501 = vpack.c.b16 %v1393, %v1392
    %v1502 = vpack.c.b16 %v1395, %v1394
    %v1503 = vpack.c.b16 %v1397, %v1396
    %v1504 = vpack.c.b16 %v1399, %v1398
    %v1505 = vpack.c.b16 %v1401, %v1400
    %v1506 = vpack.c.b16 %v1403, %v1402
    %v1507 = vpack.c.b16 %v1405, %v1404
    %v1508 = vpack.c.b16 %v1407, %v1406
    %v1509 = vpack.c.b16 %v1409, %v1408
    %v1510 = vpack.c.b16 %v1411, %v1410
    %v1511 = vpack.c.b16 %v1413, %v1412
    %v1512 = vpack.c.b16 %v1415, %v1414
    %v1513 = vpack.c.b16 %v1417, %v1416
    %v1514 = vpack.c.b16 %v1419, %v1418
    %v1515 = vpack.c.b16 %v1421, %v1420
    %v1516 = vpack.c.b16 %v1423, %v1422
    %v1517 = vpack.c.b16 %v1425, %v1424
    %v1518 = vpack.c.b16 %v1427, %v1426
    %v1519 = vpack.c.b16 %v1429, %v1428
    %v1520 = vpack.c.b16 %v1431, %v1430
    %v1521 = vpack.c.b16 %v1433, %v1432
    %v1522 = vpack.c.b16 %v1435, %v1434
    %v1523 = vpack.c.b16 %v1437, %v1436
    %v1524 = vpack.c.b16 %v1439, %v1438
    %v1525 = vpack.c.b16 %v1441, %v1440
    %v1526 = vpack.c.b16 %v1443, %v1442
    %v1527 = vpack.c.b16 %v1445, %v1444
    %v1528 = vpack.c.b16 %v1447, %v1446
    %v1529 = vpack.c.b16 %v1449, %v1448
    %v1530 = vpack.c.b16 %v1451, %v1450
    %v1531 = vpack.c.b16 %v1453, %v1452
    %v1532 = vpack.c.b16 %v1455, %v1454
    %v1533 = vpack.c.b16 %v1457, %v1456
    %v1534 = vpack.c.b16 %v1459, %v1458
    %v1535 = vpack.c.b16 %v1461, %v1460
    %v1536 = vpack.c.b16 %v1463, %v1462
    %v1537 = vpack.c.b16 %v1465, %v1464
    %v1626 = vunpack.c.l.b16 %v28
    %v1627 = vunpack.c.l.b16 %v29
    %v1628 = vunpack.c.l.b16 %v30
    %v1629 = vunpack.c.l.b16 %v31
    %v1630 = vunpack.c.l.b16 %v32
    %v1631 = vunpack.c.l.b16 %v33
    %v1632 = vunpack.c.l.b16 %v34
    %v1633 = vunpack.c.l.b16 %v35
    %v1634 = vunpack.c.l.b16 %v36
    %v1635 = vunpack.c.l.b16 %v37
    %v1636 = vunpack.c.l.b16 %v38
    %v1637 = vunpack.c.l.b16 %v39
    %v1638 = vunpack.c.l.b16 %v40
    %v1639 = vunpack.c.l.b16 %v41
    %v1640 = vunpack.c.l.b16 %v42
    %v1641 = vunpack.c.l.b16 %v43
    %v1642 = vpack.c.b16 %v1627, %v1626
    %v1643 = vpack.c.b16 %v1629, %v1628
    %v1644 = vpack.c.b16 %v1631, %v1630
    %v1645 = vpack.c.b16 %v1633, %v1632
    %v1646 = vpack.c.b16 %v1635, %v1634
    %v1647 = vpack.c.b16 %v1637, %v1636
    %v1648 = vpack.c.b16 %v1639, %v1638
    %v1649 = vpack.c.b16 %v1641, %v1640
    %1658 = vmatprep.subr.bf16.mxu0 0
    %1659 = vmatpush1.bf16.msra.mxu0 %v1642
    %1660 = vmatprep.subr.bf16.mxu0 0
    %1661 = vmatpush1.bf16.msra.mxu0 %v1643
    %1662 = vmatprep.subr.bf16.mxu0 0
    %1663 = vmatpush1.bf16.msra.mxu0 %v1644
    %1664 = vmatprep.subr.bf16.mxu0 0
    %1665 = vmatpush1.bf16.msra.mxu0 %v1645
    %1666 = vmatprep.subr.bf16.mxu0 0
    %1667 = vmatpush1.bf16.msra.mxu0 %v1646
    %1668 = vmatprep.subr.bf16.mxu0 0
    %1669 = vmatpush1.bf16.msra.mxu0 %v1647
    %1670 = vmatprep.subr.bf16.mxu0 0
    %1671 = vmatpush1.bf16.msra.mxu0 %v1648
    %1672 = vmatprep.subr.bf16.mxu0 0
    %1673 = vmatpush1.bf16.msra.mxu0 %v1649
    %1674 = vmatprep.subr.bf16.mxu0 0
    %1675 = vmatpush1.bf16.msra.mxu0 0
    %1676 = vmatprep.subr.bf16.mxu0 0
    %1677 = vmatpush1.bf16.msra.mxu0 0
    %1678 = vmatprep.subr.bf16.mxu0 0
    %1679 = vmatpush1.bf16.msra.mxu0 0
    %1680 = vmatprep.subr.bf16.mxu0 0
    %1681 = vmatpush1.bf16.msra.mxu0 0
    %1682 = vmatprep.subr.bf16.mxu0 0
    %1683 = vmatpush1.bf16.msra.mxu0 0
    %1684 = vmatprep.subr.bf16.mxu0 0
    %1685 = vmatpush1.bf16.msra.mxu0 0
    %1686 = vmatprep.subr.bf16.mxu0 0
    %1687 = vmatpush1.bf16.msra.mxu0 0
    %1688 = vmatprep.subr.bf16.mxu0 0
    %1689 = vmatpush1.bf16.msra.mxu0 0
    %1690 = vmatprep.mubr.bf16.mxu0 0
    %1691 = vmatmul.mubr.bf16.gmra.mrb[0].mxu0 %v1466
    %v1692 = vpop.f32.mrb[0].mxu0
    %v1693 = vadd.f32 %v461, %v1692
    %v1694 = vpop.f32.mrb[0].mxu0
    %v1695 = vpop.f32.mrb[0].mxu0
    %v1696 = vadd.f32 %v466, %v1695
    %v1697 = vpop.f32.mrb[0].mxu0
    %1698 = vmatprep.mubr.bf16.mxu0 0
    %1699 = vmatmul.mubr.bf16.gmra.mrb[0].mxu0 %v1467
    %v1700 = vpop.f32.mrb[0].mxu0
    %v1701 = vadd.f32 %v471, %v1700
    %v1702 = vpop.f32.mrb[0].mxu0
    %v1703 = vpop.f32.mrb[0].mxu0
    %v1704 = vadd.f32 %v476, %v1703
    %v1705 = vpop.f32.mrb[0].mxu0
    %1706 = vmatprep.mubr.bf16.mxu0 0
    %1707 = vmatmul.mubr.bf16.gmra.mrb[0].mxu0 %v1468
    %v1708 = vpop.f32.mrb[0].mxu0
    %v1709 = vadd.f32 %v481, %v1708
    %v1710 = vpop.f32.mrb[0].mxu0
    %v1711 = vpop.f32.mrb[0].mxu0
    %v1712 = vadd.f32 %v486, %v1711
    %v1713 = vpop.f32.mrb[0].mxu0
    %1714 = vmatprep.mubr.bf16.mxu0 0
    %1715 = vmatmul.mubr.bf16.gmra.mrb[0].mxu0 %v1469
    %v1716 = vpop.f32.mrb[0].mxu0
    %v1717 = vadd.f32 %v491, %v1716
    %v1718 = vpop.f32.mrb[0].mxu0
    %v1719 = vpop.f32.mrb[0].mxu0
    %v1720 = vadd.f32 %v496, %v1719
    %v1721 = vpop.f32.mrb[0].mxu0
    %1722 = vmatprep.mubr.bf16.mxu0 0
    %1723 = vmatmul.mubr.bf16.gmra.mrb[0].mxu0 %v1470
    %v1724 = vpop.f32.mrb[0].mxu0
    %v1725 = vadd.f32 %v501, %v1724
    %v1726 = vpop.f32.mrb[0].mxu0
    %v1727 = vpop.f32.mrb[0].mxu0
    %v1728 = vadd.f32 %v506, %v1727
    %v1729 = vpop.f32.mrb[0].mxu0
    %1730 = vmatprep.mubr.bf16.mxu0 0
    %1731 = vmatmul.mubr.bf16.gmra.mrb[0].mxu0 %v1471
    %v1732 = vpop.f32.mrb[0].mxu0
    %v1733 = vadd.f32 %v511, %v1732
    %v1734 = vpop.f32.mrb[0].mxu0
    %v1735 = vpop.f32.mrb[0].mxu0
    %v1736 = vadd.f32 %v516, %v1735
    %v1737 = vpop.f32.mrb[0].mxu0
    %1738 = vmatprep.mubr.bf16.mxu0 0
    %1739 = vmatmul.mubr.bf16.gmra.mrb[0].mxu0 %v1472
    %v1740 = vpop.f32.mrb[0].mxu0
    %v1741 = vadd.f32 %v521, %v1740
    %v1742 = vpop.f32.mrb[0].mxu0
    %v1743 = vpop.f32.mrb[0].mxu0
    %v1744 = vadd.f32 %v526, %v1743
    %v1745 = vpop.f32.mrb[0].mxu0
    %1746 = vmatprep.mubr.bf16.mxu0 0
    %1747 = vmatmul.mubr.bf16.gmra.mrb[0].mxu0 %v1473
    %v1748 = vpop.f32.mrb[0].mxu0
    %v1749 = vadd.f32 %v531, %v1748
    %v1750 = vpop.f32.mrb[0].mxu0
    %v1751 = vpop.f32.mrb[0].mxu0
    %v1752 = vadd.f32 %v536, %v1751
    %v1753 = vpop.f32.mrb[0].mxu0
    %1754 = vmatprep.mubr.bf16.mxu0 0
    %1755 = vmatmul.mubr.bf16.gmra.mrb[0].mxu0 %v1474
    %v1756 = vpop.f32.mrb[0].mxu0
    %v1757 = vadd.f32 %v541, %v1756
    %v1758 = vpop.f32.mrb[0].mxu0
    %v1759 = vpop.f32.mrb[0].mxu0
    %v1760 = vadd.f32 %v546, %v1759
    %v1761 = vpop.f32.mrb[0].mxu0
    %1762 = vmatprep.mubr.bf16.mxu0 0
    %1763 = vmatmul.mubr.bf16.gmra.mrb[0].mxu0 %v1475
    %v1764 = vpop.f32.mrb[0].mxu0
    %v1765 = vadd.f32 %v551, %v1764
    %v1766 = vpop.f32.mrb[0].mxu0
    %v1767 = vpop.f32.mrb[0].mxu0
    %v1768 = vadd.f32 %v556, %v1767
    %v1769 = vpop.f32.mrb[0].mxu0
    %1770 = vmatprep.mubr.bf16.mxu0 0
    %1771 = vmatmul.mubr.bf16.gmra.mrb[0].mxu0 %v1476
    %v1772 = vpop.f32.mrb[0].mxu0
    %v1773 = vadd.f32 %v561, %v1772
    %v1774 = vpop.f32.mrb[0].mxu0
    %v1775 = vpop.f32.mrb[0].mxu0
    %v1776 = vadd.f32 %v566, %v1775
    %v1777 = vpop.f32.mrb[0].mxu0
    %1778 = vmatprep.mubr.bf16.mxu0 0
    %1779 = vmatmul.mubr.bf16.gmra.mrb[0].mxu0 %v1477
    %v1780 = vpop.f32.mrb[0].mxu0
    %v1781 = vadd.f32 %v571, %v1780
    %v1782 = vpop.f32.mrb[0].mxu0
    %v1783 = vpop.f32.mrb[0].mxu0
    %v1784 = vadd.f32 %v576, %v1783
    %v1785 = vpop.f32.mrb[0].mxu0
    %1786 = vmatprep.mubr.bf16.mxu0 0
    %1787 = vmatmul.mubr.bf16.gmra.mrb[0].mxu0 %v1478
    %v1788 = vpop.f32.mrb[0].mxu0
    %v1789 = vadd.f32 %v581, %v1788
    %v1790 = vpop.f32.mrb[0].mxu0
    %v1791 = vpop.f32.mrb[0].mxu0
    %v1792 = vadd.f32 %v586, %v1791
    %v1793 = vpop.f32.mrb[0].mxu0
    %1794 = vmatprep.mubr.bf16.mxu0 0
    %1795 = vmatmul.mubr.bf16.gmra.mrb[0].mxu0 %v1479
    %v1796 = vpop.f32.mrb[0].mxu0
    %v1797 = vadd.f32 %v591, %v1796
    %v1798 = vpop.f32.mrb[0].mxu0
    %v1799 = vpop.f32.mrb[0].mxu0
    %v1800 = vadd.f32 %v596, %v1799
    %v1801 = vpop.f32.mrb[0].mxu0
    %1802 = vmatprep.mubr.bf16.mxu0 0
    %1803 = vmatmul.mubr.bf16.gmra.mrb[0].mxu0 %v1480
    %v1804 = vpop.f32.mrb[0].mxu0
    %v1805 = vadd.f32 %v601, %v1804
    %v1806 = vpop.f32.mrb[0].mxu0
    %v1807 = vpop.f32.mrb[0].mxu0
    %v1808 = vadd.f32 %v606, %v1807
    %v1809 = vpop.f32.mrb[0].mxu0
    %1810 = vmatprep.mubr.bf16.mxu0 0
    %1811 = vmatmul.mubr.bf16.gmra.mrb[0].mxu0 %v1481
    %v1812 = vpop.f32.mrb[0].mxu0
    %v1813 = vadd.f32 %v611, %v1812
    %v1814 = vpop.f32.mrb[0].mxu0
    %v1815 = vpop.f32.mrb[0].mxu0
    %v1816 = vadd.f32 %v616, %v1815
    %v1817 = vpop.f32.mrb[0].mxu0
    %1818 = vmatprep.mubr.bf16.mxu0 0
    %1819 = vmatmul.mubr.bf16.gmra.mrb[0].mxu0 %v1482
    %v1820 = vpop.f32.mrb[0].mxu0
    %v1821 = vadd.f32 %v621, %v1820
    %v1822 = vpop.f32.mrb[0].mxu0
    %v1823 = vpop.f32.mrb[0].mxu0
    %v1824 = vadd.f32 %v626, %v1823
    %v1825 = vpop.f32.mrb[0].mxu0
    %1826 = vmatprep.mubr.bf16.mxu0 0
    %1827 = vmatmul.mubr.bf16.gmra.mrb[0].mxu0 %v1483
    %v1828 = vpop.f32.mrb[0].mxu0
    %v1829 = vadd.f32 %v631, %v1828
    %v1830 = vpop.f32.mrb[0].mxu0
    %v1831 = vpop.f32.mrb[0].mxu0
    %v1832 = vadd.f32 %v636, %v1831
    %v1833 = vpop.f32.mrb[0].mxu0
    %1834 = vmatprep.mubr.bf16.mxu0 0
    %1835 = vmatmul.mubr.bf16.gmra.mrb[0].mxu0 %v1484
    %v1836 = vpop.f32.mrb[0].mxu0
    %v1837 = vadd.f32 %v641, %v1836
    %v1838 = vpop.f32.mrb[0].mxu0
    %v1839 = vpop.f32.mrb[0].mxu0
    %v1840 = vadd.f32 %v646, %v1839
    %v1841 = vpop.f32.mrb[0].mxu0
    %1842 = vmatprep.mubr.bf16.mxu0 0
    %1843 = vmatmul.mubr.bf16.gmra.mrb[0].mxu0 %v1485
    %v1844 = vpop.f32.mrb[0].mxu0
    %v1845 = vadd.f32 %v651, %v1844
    %v1846 = vpop.f32.mrb[0].mxu0
    %v1847 = vpop.f32.mrb[0].mxu0
    %v1848 = vadd.f32 %v656, %v1847
    %v1849 = vpop.f32.mrb[0].mxu0
    %1850 = vmatprep.mubr.bf16.mxu0 0
    %1851 = vmatmul.mubr.bf16.gmra.mrb[0].mxu0 %v1486
    %v1852 = vpop.f32.mrb[0].mxu0
    %v1853 = vadd.f32 %v661, %v1852
    %v1854 = vpop.f32.mrb[0].mxu0
    %v1855 = vpop.f32.mrb[0].mxu0
    %v1856 = vadd.f32 %v666, %v1855
    %v1857 = vpop.f32.mrb[0].mxu0
    %1858 = vmatprep.mubr.bf16.mxu0 0
    %1859 = vmatmul.mubr.bf16.gmra.mrb[0].mxu0 %v1487
    %v1860 = vpop.f32.mrb[0].mxu0
    %v1861 = vadd.f32 %v671, %v1860
    %v1862 = vpop.f32.mrb[0].mxu0
    %v1863 = vpop.f32.mrb[0].mxu0
    %v1864 = vadd.f32 %v676, %v1863
    %v1865 = vpop.f32.mrb[0].mxu0
    %1866 = vmatprep.mubr.bf16.mxu0 0
    %1867 = vmatmul.mubr.bf16.gmra.mrb[0].mxu0 %v1488
    %v1868 = vpop.f32.mrb[0].mxu0
    %v1869 = vadd.f32 %v681, %v1868
    %v1870 = vpop.f32.mrb[0].mxu0
    %v1871 = vpop.f32.mrb[0].mxu0
    %v1872 = vadd.f32 %v686, %v1871
    %v1873 = vpop.f32.mrb[0].mxu0
    %1874 = vmatprep.mubr.bf16.mxu0 0
    %1875 = vmatmul.mubr.bf16.gmra.mrb[0].mxu0 %v1489
    %v1876 = vpop.f32.mrb[0].mxu0
    %v1877 = vadd.f32 %v691, %v1876
    %v1878 = vpop.f32.mrb[0].mxu0
    %v1879 = vpop.f32.mrb[0].mxu0
    %v1880 = vadd.f32 %v696, %v1879
    %v1881 = vpop.f32.mrb[0].mxu0
    %1882 = vmatprep.mubr.bf16.mxu0 0
    %1883 = vmatmul.mubr.bf16.gmra.mrb[0].mxu0 %v1490
    %v1884 = vpop.f32.mrb[0].mxu0
    %v1885 = vadd.f32 %v701, %v1884
    %v1886 = vpop.f32.mrb[0].mxu0
    %v1887 = vpop.f32.mrb[0].mxu0
    %v1888 = vadd.f32 %v706, %v1887
    %v1889 = vpop.f32.mrb[0].mxu0
    %1890 = vmatprep.mubr.bf16.mxu0 0
    %1891 = vmatmul.mubr.bf16.gmra.mrb[0].mxu0 %v1491
    %v1892 = vpop.f32.mrb[0].mxu0
    %v1893 = vadd.f32 %v711, %v1892
    %v1894 = vpop.f32.mrb[0].mxu0
    %v1895 = vpop.f32.mrb[0].mxu0
    %v1896 = vadd.f32 %v716, %v1895
    %v1897 = vpop.f32.mrb[0].mxu0
    %1898 = vmatprep.mubr.bf16.mxu0 0
    %1899 = vmatmul.mubr.bf16.gmra.mrb[0].mxu0 %v1492
    %v1900 = vpop.f32.mrb[0].mxu0
    %v1901 = vadd.f32 %v721, %v1900
    %v1902 = vpop.f32.mrb[0].mxu0
    %v1903 = vpop.f32.mrb[0].mxu0
    %v1904 = vadd.f32 %v726, %v1903
    %v1905 = vpop.f32.mrb[0].mxu0
    %1906 = vmatprep.mubr.bf16.mxu0 0
    %1907 = vmatmul.mubr.bf16.gmra.mrb[0].mxu0 %v1493
    %v1908 = vpop.f32.mrb[0].mxu0
    %v1909 = vadd.f32 %v731, %v1908
    %v1910 = vpop.f32.mrb[0].mxu0
    %v1911 = vpop.f32.mrb[0].mxu0
    %v1912 = vadd.f32 %v736, %v1911
    %v1913 = vpop.f32.mrb[0].mxu0
    %1914 = vmatprep.mubr.bf16.mxu0 0
    %1915 = vmatmul.mubr.bf16.gmra.mrb[0].mxu0 %v1494
    %v1916 = vpop.f32.mrb[0].mxu0
    %v1917 = vadd.f32 %v741, %v1916
    %v1918 = vpop.f32.mrb[0].mxu0
    %v1919 = vpop.f32.mrb[0].mxu0
    %v1920 = vadd.f32 %v746, %v1919
    %v1921 = vpop.f32.mrb[0].mxu0
    %1922 = vmatprep.mubr.bf16.mxu0 0
    %1923 = vmatmul.mubr.bf16.gmra.mrb[0].mxu0 %v1495
    %v1924 = vpop.f32.mrb[0].mxu0
    %v1925 = vadd.f32 %v751, %v1924
    %v1926 = vpop.f32.mrb[0].mxu0
    %v1927 = vpop.f32.mrb[0].mxu0
    %v1928 = vadd.f32 %v756, %v1927
    %v1929 = vpop.f32.mrb[0].mxu0
    %1930 = vmatprep.mubr.bf16.mxu0 0
    %1931 = vmatmul.mubr.bf16.gmra.mrb[0].mxu0 %v1496
    %v1932 = vpop.f32.mrb[0].mxu0
    %v1933 = vadd.f32 %v761, %v1932
    %v1934 = vpop.f32.mrb[0].mxu0
    %v1935 = vpop.f32.mrb[0].mxu0
    %v1936 = vadd.f32 %v766, %v1935
    %v1937 = vpop.f32.mrb[0].mxu0
    %1938 = vmatprep.mubr.bf16.mxu0 0
    %1939 = vmatmul.mubr.bf16.gmra.mrb[0].mxu0 %v1497
    %v1940 = vpop.f32.mrb[0].mxu0
    %v1941 = vadd.f32 %v771, %v1940
    %v1942 = vpop.f32.mrb[0].mxu0
    %v1943 = vpop.f32.mrb[0].mxu0
    %v1944 = vadd.f32 %v776, %v1943
    %v1945 = vpop.f32.mrb[0].mxu0
    %1946 = vmatprep.mubr.bf16.mxu0 0
    %1947 = vmatmul.mubr.bf16.gmra.mrb[0].mxu0 %v1498
    %v1948 = vpop.f32.mrb[0].mxu0
    %v1949 = vadd.f32 %v781, %v1948
    %v1950 = vpop.f32.mrb[0].mxu0
    %v1951 = vpop.f32.mrb[0].mxu0
    %v1952 = vadd.f32 %v786, %v1951
    %v1953 = vpop.f32.mrb[0].mxu0
    %1954 = vmatprep.mubr.bf16.mxu0 0
    %1955 = vmatmul.mubr.bf16.gmra.mrb[0].mxu0 %v1499
    %v1956 = vpop.f32.mrb[0].mxu0
    %v1957 = vadd.f32 %v791, %v1956
    %v1958 = vpop.f32.mrb[0].mxu0
    %v1959 = vpop.f32.mrb[0].mxu0
    %v1960 = vadd.f32 %v796, %v1959
    %v1961 = vpop.f32.mrb[0].mxu0
    %1962 = vmatprep.mubr.bf16.mxu0 0
    %1963 = vmatmul.mubr.bf16.gmra.mrb[0].mxu0 %v1500
    %v1964 = vpop.f32.mrb[0].mxu0
    %v1965 = vadd.f32 %v801, %v1964
    %v1966 = vpop.f32.mrb[0].mxu0
    %v1967 = vpop.f32.mrb[0].mxu0
    %v1968 = vadd.f32 %v806, %v1967
    %v1969 = vpop.f32.mrb[0].mxu0
    %1970 = vmatprep.mubr.bf16.mxu0 0
    %1971 = vmatmul.mubr.bf16.gmra.mrb[0].mxu0 %v1501
    %v1972 = vpop.f32.mrb[0].mxu0
    %v1973 = vadd.f32 %v811, %v1972
    %v1974 = vpop.f32.mrb[0].mxu0
    %v1975 = vpop.f32.mrb[0].mxu0
    %v1976 = vadd.f32 %v816, %v1975
    %v1977 = vpop.f32.mrb[0].mxu0
    %1978 = vmatprep.mubr.bf16.mxu0 0
    %1979 = vmatmul.mubr.bf16.gmra.mrb[0].mxu0 %v1502
    %v1980 = vpop.f32.mrb[0].mxu0
    %v1981 = vadd.f32 %v821, %v1980
    %v1982 = vpop.f32.mrb[0].mxu0
    %v1983 = vpop.f32.mrb[0].mxu0
    %v1984 = vadd.f32 %v826, %v1983
    %v1985 = vpop.f32.mrb[0].mxu0
    %1986 = vmatprep.mubr.bf16.mxu0 0
    %1987 = vmatmul.mubr.bf16.gmra.mrb[0].mxu0 %v1503
    %v1988 = vpop.f32.mrb[0].mxu0
    %v1989 = vadd.f32 %v831, %v1988
    %v1990 = vpop.f32.mrb[0].mxu0
    %v1991 = vpop.f32.mrb[0].mxu0
    %v1992 = vadd.f32 %v836, %v1991
    %v1993 = vpop.f32.mrb[0].mxu0
    %1994 = vmatprep.mubr.bf16.mxu0 0
    %1995 = vmatmul.mubr.bf16.gmra.mrb[0].mxu0 %v1504
    %v1996 = vpop.f32.mrb[0].mxu0
    %v1997 = vadd.f32 %v841, %v1996
    %v1998 = vpop.f32.mrb[0].mxu0
    %v1999 = vpop.f32.mrb[0].mxu0
    %v2000 = vadd.f32 %v846, %v1999
    %v2001 = vpop.f32.mrb[0].mxu0
    %2002 = vmatprep.mubr.bf16.mxu0 0
    %2003 = vmatmul.mubr.bf16.gmra.mrb[0].mxu0 %v1505
    %v2004 = vpop.f32.mrb[0].mxu0
    %v2005 = vadd.f32 %v851, %v2004
    %v2006 = vpop.f32.mrb[0].mxu0
    %v2007 = vpop.f32.mrb[0].mxu0
    %v2008 = vadd.f32 %v856, %v2007
    %v2009 = vpop.f32.mrb[0].mxu0
    %2010 = vmatprep.mubr.bf16.mxu0 0
    %2011 = vmatmul.mubr.bf16.gmra.mrb[0].mxu0 %v1506
    %v2012 = vpop.f32.mrb[0].mxu0
    %v2013 = vadd.f32 %v861, %v2012
    %v2014 = vpop.f32.mrb[0].mxu0
    %v2015 = vpop.f32.mrb[0].mxu0
    %v2016 = vadd.f32 %v866, %v2015
    %v2017 = vpop.f32.mrb[0].mxu0
    %2018 = vmatprep.mubr.bf16.mxu0 0
    %2019 = vmatmul.mubr.bf16.gmra.mrb[0].mxu0 %v1507
    %v2020 = vpop.f32.mrb[0].mxu0
    %v2021 = vadd.f32 %v871, %v2020
    %v2022 = vpop.f32.mrb[0].mxu0
    %v2023 = vpop.f32.mrb[0].mxu0
    %v2024 = vadd.f32 %v876, %v2023
    %v2025 = vpop.f32.mrb[0].mxu0
    %2026 = vmatprep.mubr.bf16.mxu0 0
    %2027 = vmatmul.mubr.bf16.gmra.mrb[0].mxu0 %v1508
    %v2028 = vpop.f32.mrb[0].mxu0
    %v2029 = vadd.f32 %v881, %v2028
    %v2030 = vpop.f32.mrb[0].mxu0
    %v2031 = vpop.f32.mrb[0].mxu0
    %v2032 = vadd.f32 %v886, %v2031
    %v2033 = vpop.f32.mrb[0].mxu0
    %2034 = vmatprep.mubr.bf16.mxu0 0
    %2035 = vmatmul.mubr.bf16.gmra.mrb[0].mxu0 %v1509
    %v2036 = vpop.f32.mrb[0].mxu0
    %v2037 = vadd.f32 %v891, %v2036
    %v2038 = vpop.f32.mrb[0].mxu0
    %v2039 = vpop.f32.mrb[0].mxu0
    %v2040 = vadd.f32 %v896, %v2039
    %v2041 = vpop.f32.mrb[0].mxu0
    %2042 = vmatprep.mubr.bf16.mxu0 0
    %2043 = vmatmul.mubr.bf16.gmra.mrb[0].mxu0 %v1510
    %v2044 = vpop.f32.mrb[0].mxu0
    %v2045 = vadd.f32 %v901, %v2044
    %v2046 = vpop.f32.mrb[0].mxu0
    %v2047 = vpop.f32.mrb[0].mxu0
    %v2048 = vadd.f32 %v906, %v2047
    %v2049 = vpop.f32.mrb[0].mxu0
    %2050 = vmatprep.mubr.bf16.mxu0 0
    %2051 = vmatmul.mubr.bf16.gmra.mrb[0].mxu0 %v1511
    %v2052 = vpop.f32.mrb[0].mxu0
    %v2053 = vadd.f32 %v911, %v2052
    %v2054 = vpop.f32.mrb[0].mxu0
    %v2055 = vpop.f32.mrb[0].mxu0
    %v2056 = vadd.f32 %v916, %v2055
    %v2057 = vpop.f32.mrb[0].mxu0
    %2058 = vmatprep.mubr.bf16.mxu0 0
    %2059 = vmatmul.mubr.bf16.gmra.mrb[0].mxu0 %v1512
    %v2060 = vpop.f32.mrb[0].mxu0
    %v2061 = vadd.f32 %v921, %v2060
    %v2062 = vpop.f32.mrb[0].mxu0
    %v2063 = vpop.f32.mrb[0].mxu0
    %v2064 = vadd.f32 %v926, %v2063
    %v2065 = vpop.f32.mrb[0].mxu0
    %2066 = vmatprep.mubr.bf16.mxu0 0
    %2067 = vmatmul.mubr.bf16.gmra.mrb[0].mxu0 %v1513
    %v2068 = vpop.f32.mrb[0].mxu0
    %v2069 = vadd.f32 %v931, %v2068
    %v2070 = vpop.f32.mrb[0].mxu0
    %v2071 = vpop.f32.mrb[0].mxu0
    %v2072 = vadd.f32 %v936, %v2071
    %v2073 = vpop.f32.mrb[0].mxu0
    %2074 = vmatprep.mubr.bf16.mxu0 0
    %2075 = vmatmul.mubr.bf16.gmra.mrb[0].mxu0 %v1514
    %v2076 = vpop.f32.mrb[0].mxu0
    %v2077 = vadd.f32 %v941, %v2076
    %v2078 = vpop.f32.mrb[0].mxu0
    %v2079 = vpop.f32.mrb[0].mxu0
    %v2080 = vadd.f32 %v946, %v2079
    %v2081 = vpop.f32.mrb[0].mxu0
    %2082 = vmatprep.mubr.bf16.mxu0 0
    %2083 = vmatmul.mubr.bf16.gmra.mrb[0].mxu0 %v1515
    %v2084 = vpop.f32.mrb[0].mxu0
    %v2085 = vadd.f32 %v951, %v2084
    %v2086 = vpop.f32.mrb[0].mxu0
    %v2087 = vpop.f32.mrb[0].mxu0
    %v2088 = vadd.f32 %v956, %v2087
    %v2089 = vpop.f32.mrb[0].mxu0
    %2090 = vmatprep.mubr.bf16.mxu0 0
    %2091 = vmatmul.mubr.bf16.gmra.mrb[0].mxu0 %v1516
    %v2092 = vpop.f32.mrb[0].mxu0
    %v2093 = vadd.f32 %v961, %v2092
    %v2094 = vpop.f32.mrb[0].mxu0
    %v2095 = vpop.f32.mrb[0].mxu0
    %v2096 = vadd.f32 %v966, %v2095
    %v2097 = vpop.f32.mrb[0].mxu0
    %2098 = vmatprep.mubr.bf16.mxu0 0
    %2099 = vmatmul.mubr.bf16.gmra.mrb[0].mxu0 %v1517
    %v2100 = vpop.f32.mrb[0].mxu0
    %v2101 = vadd.f32 %v971, %v2100
    %v2102 = vpop.f32.mrb[0].mxu0
    %v2103 = vpop.f32.mrb[0].mxu0
    %v2104 = vadd.f32 %v976, %v2103
    %v2105 = vpop.f32.mrb[0].mxu0
    %2106 = vmatprep.mubr.bf16.mxu0 0
    %2107 = vmatmul.mubr.bf16.gmra.mrb[0].mxu0 %v1518
    %v2108 = vpop.f32.mrb[0].mxu0
    %v2109 = vadd.f32 %v981, %v2108
    %v2110 = vpop.f32.mrb[0].mxu0
    %v2111 = vpop.f32.mrb[0].mxu0
    %v2112 = vadd.f32 %v986, %v2111
    %v2113 = vpop.f32.mrb[0].mxu0
    %2114 = vmatprep.mubr.bf16.mxu0 0
    %2115 = vmatmul.mubr.bf16.gmra.mrb[0].mxu0 %v1519
    %v2116 = vpop.f32.mrb[0].mxu0
    %v2117 = vadd.f32 %v991, %v2116
    %v2118 = vpop.f32.mrb[0].mxu0
    %v2119 = vpop.f32.mrb[0].mxu0
    %v2120 = vadd.f32 %v996, %v2119
    %v2121 = vpop.f32.mrb[0].mxu0
    %2122 = vmatprep.mubr.bf16.mxu0 0
    %2123 = vmatmul.mubr.bf16.gmra.mrb[0].mxu0 %v1520
    %v2124 = vpop.f32.mrb[0].mxu0
    %v2125 = vadd.f32 %v1001, %v2124
    %v2126 = vpop.f32.mrb[0].mxu0
    %v2127 = vpop.f32.mrb[0].mxu0
    %v2128 = vadd.f32 %v1006, %v2127
    %v2129 = vpop.f32.mrb[0].mxu0
    %2130 = vmatprep.mubr.bf16.mxu0 0
    %2131 = vmatmul.mubr.bf16.gmra.mrb[0].mxu0 %v1521
    %v2132 = vpop.f32.mrb[0].mxu0
    %v2133 = vadd.f32 %v1011, %v2132
    %v2134 = vpop.f32.mrb[0].mxu0
    %v2135 = vpop.f32.mrb[0].mxu0
    %v2136 = vadd.f32 %v1016, %v2135
    %v2137 = vpop.f32.mrb[0].mxu0
    %2138 = vmatprep.mubr.bf16.mxu0 0
    %2139 = vmatmul.mubr.bf16.gmra.mrb[0].mxu0 %v1522
    %v2140 = vpop.f32.mrb[0].mxu0
    %v2141 = vadd.f32 %v1021, %v2140
    %v2142 = vpop.f32.mrb[0].mxu0
    %v2143 = vpop.f32.mrb[0].mxu0
    %v2144 = vadd.f32 %v1026, %v2143
    %v2145 = vpop.f32.mrb[0].mxu0
    %2146 = vmatprep.mubr.bf16.mxu0 0
    %2147 = vmatmul.mubr.bf16.gmra.mrb[0].mxu0 %v1523
    %v2148 = vpop.f32.mrb[0].mxu0
    %v2149 = vadd.f32 %v1031, %v2148
    %v2150 = vpop.f32.mrb[0].mxu0
    %v2151 = vpop.f32.mrb[0].mxu0
    %v2152 = vadd.f32 %v1036, %v2151
    %v2153 = vpop.f32.mrb[0].mxu0
    %2154 = vmatprep.mubr.bf16.mxu0 0
    %2155 = vmatmul.mubr.bf16.gmra.mrb[0].mxu0 %v1524
    %v2156 = vpop.f32.mrb[0].mxu0
    %v2157 = vadd.f32 %v1041, %v2156
    %v2158 = vpop.f32.mrb[0].mxu0
    %v2159 = vpop.f32.mrb[0].mxu0
    %v2160 = vadd.f32 %v1046, %v2159
    %v2161 = vpop.f32.mrb[0].mxu0
    %2162 = vmatprep.mubr.bf16.mxu0 0
    %2163 = vmatmul.mubr.bf16.gmra.mrb[0].mxu0 %v1525
    %v2164 = vpop.f32.mrb[0].mxu0
    %v2165 = vadd.f32 %v1051, %v2164
    %v2166 = vpop.f32.mrb[0].mxu0
    %v2167 = vpop.f32.mrb[0].mxu0
    %v2168 = vadd.f32 %v1056, %v2167
    %v2169 = vpop.f32.mrb[0].mxu0
    %2170 = vmatprep.mubr.bf16.mxu0 0
    %2171 = vmatmul.mubr.bf16.gmra.mrb[0].mxu0 %v1526
    %v2172 = vpop.f32.mrb[0].mxu0
    %v2173 = vadd.f32 %v1061, %v2172
    %v2174 = vpop.f32.mrb[0].mxu0
    %v2175 = vpop.f32.mrb[0].mxu0
    %v2176 = vadd.f32 %v1066, %v2175
    %v2177 = vpop.f32.mrb[0].mxu0
    %2178 = vmatprep.mubr.bf16.mxu0 0
    %2179 = vmatmul.mubr.bf16.gmra.mrb[0].mxu0 %v1527
    %v2180 = vpop.f32.mrb[0].mxu0
    %v2181 = vadd.f32 %v1071, %v2180
    %v2182 = vpop.f32.mrb[0].mxu0
    %v2183 = vpop.f32.mrb[0].mxu0
    %v2184 = vadd.f32 %v1076, %v2183
    %v2185 = vpop.f32.mrb[0].mxu0
    %2186 = vmatprep.mubr.bf16.mxu0 0
    %2187 = vmatmul.mubr.bf16.gmra.mrb[0].mxu0 %v1528
    %v2188 = vpop.f32.mrb[0].mxu0
    %v2189 = vadd.f32 %v1081, %v2188
    %v2190 = vpop.f32.mrb[0].mxu0
    %v2191 = vpop.f32.mrb[0].mxu0
    %v2192 = vadd.f32 %v1086, %v2191
    %v2193 = vpop.f32.mrb[0].mxu0
    %2194 = vmatprep.mubr.bf16.mxu0 0
    %2195 = vmatmul.mubr.bf16.gmra.mrb[0].mxu0 %v1529
    %v2196 = vpop.f32.mrb[0].mxu0
    %v2197 = vadd.f32 %v1091, %v2196
    %v2198 = vpop.f32.mrb[0].mxu0
    %v2199 = vpop.f32.mrb[0].mxu0
    %v2200 = vadd.f32 %v1096, %v2199
    %v2201 = vpop.f32.mrb[0].mxu0
    %2202 = vmatprep.mubr.bf16.mxu0 0
    %2203 = vmatmul.mubr.bf16.gmra.mrb[0].mxu0 %v1530
    %v2204 = vpop.f32.mrb[0].mxu0
    %v2205 = vadd.f32 %v1101, %v2204
    %v2206 = vpop.f32.mrb[0].mxu0
    %v2207 = vpop.f32.mrb[0].mxu0
    %v2208 = vadd.f32 %v1106, %v2207
    %v2209 = vpop.f32.mrb[0].mxu0
    %2210 = vmatprep.mubr.bf16.mxu0 0
    %2211 = vmatmul.mubr.bf16.gmra.mrb[0].mxu0 %v1531
    %v2212 = vpop.f32.mrb[0].mxu0
    %v2213 = vadd.f32 %v1111, %v2212
    %v2214 = vpop.f32.mrb[0].mxu0
    %v2215 = vpop.f32.mrb[0].mxu0
    %v2216 = vadd.f32 %v1116, %v2215
    %v2217 = vpop.f32.mrb[0].mxu0
    %2218 = vmatprep.mubr.bf16.mxu0 0
    %2219 = vmatmul.mubr.bf16.gmra.mrb[0].mxu0 %v1532
    %v2220 = vpop.f32.mrb[0].mxu0
    %v2221 = vadd.f32 %v1121, %v2220
    %v2222 = vpop.f32.mrb[0].mxu0
    %v2223 = vpop.f32.mrb[0].mxu0
    %v2224 = vadd.f32 %v1126, %v2223
    %v2225 = vpop.f32.mrb[0].mxu0
    %2226 = vmatprep.mubr.bf16.mxu0 0
    %2227 = vmatmul.mubr.bf16.gmra.mrb[0].mxu0 %v1533
    %v2228 = vpop.f32.mrb[0].mxu0
    %v2229 = vadd.f32 %v1131, %v2228
    %v2230 = vpop.f32.mrb[0].mxu0
    %v2231 = vpop.f32.mrb[0].mxu0
    %v2232 = vadd.f32 %v1136, %v2231
    %v2233 = vpop.f32.mrb[0].mxu0
    %2234 = vmatprep.mubr.bf16.mxu0 0
    %2235 = vmatmul.mubr.bf16.gmra.mrb[0].mxu0 %v1534
    %v2236 = vpop.f32.mrb[0].mxu0
    %v2237 = vadd.f32 %v1141, %v2236
    %v2238 = vpop.f32.mrb[0].mxu0
    %v2239 = vpop.f32.mrb[0].mxu0
    %v2240 = vadd.f32 %v1146, %v2239
    %v2241 = vpop.f32.mrb[0].mxu0
    %2242 = vmatprep.mubr.bf16.mxu0 0
    %2243 = vmatmul.mubr.bf16.gmra.mrb[0].mxu0 %v1535
    %v2244 = vpop.f32.mrb[0].mxu0
    %v2245 = vadd.f32 %v1151, %v2244
    %v2246 = vpop.f32.mrb[0].mxu0
    %v2247 = vpop.f32.mrb[0].mxu0
    %v2248 = vadd.f32 %v1156, %v2247
    %v2249 = vpop.f32.mrb[0].mxu0
    %2250 = vmatprep.mubr.bf16.mxu0 0
    %2251 = vmatmul.mubr.bf16.gmra.mrb[0].mxu0 %v1536
    %v2252 = vpop.f32.mrb[0].mxu0
    %v2253 = vadd.f32 %v1161, %v2252
    %v2254 = vpop.f32.mrb[0].mxu0
    %v2255 = vpop.f32.mrb[0].mxu0
    %v2256 = vadd.f32 %v1166, %v2255
    %v2257 = vpop.f32.mrb[0].mxu0
    %2258 = vmatprep.mubr.bf16.mxu0 0
    %2259 = vmatmul.mubr.bf16.gmra.mrb[0].mxu0 %v1537
    %v2260 = vpop.f32.mrb[0].mxu0
    %v2261 = vadd.f32 %v1171, %v2260
    %v2262 = vpop.f32.mrb[0].mxu0
    %v2263 = vpop.f32.mrb[0].mxu0
    %v2264 = vadd.f32 %v1176, %v2263
    %v2265 = vpop.f32.mrb[0].mxu0
    %2266 = vdwg.mxu0
    %v2267 = vmax.f32 %v1693, 0.0
    %v2268 = vmax.f32 %v1696, 0.0
    %v2269 = vmax.f32 %v1701, 0.0
    %v2270 = vmax.f32 %v1704, 0.0
    %v2271 = vmax.f32 %v1709, 0.0
    %v2272 = vmax.f32 %v1712, 0.0
    %v2273 = vmax.f32 %v1717, 0.0
    %v2274 = vmax.f32 %v1720, 0.0
    %v2275 = vmax.f32 %v1725, 0.0
    %v2276 = vmax.f32 %v1728, 0.0
    %v2277 = vmax.f32 %v1733, 0.0
    %v2278 = vmax.f32 %v1736, 0.0
    %v2279 = vmax.f32 %v1741, 0.0
    %v2280 = vmax.f32 %v1744, 0.0
    %v2281 = vmax.f32 %v1749, 0.0
    %v2282 = vmax.f32 %v1752, 0.0
    %v2283 = vmax.f32 %v1757, 0.0
    %v2284 = vmax.f32 %v1760, 0.0
    %v2285 = vmax.f32 %v1765, 0.0
    %v2286 = vmax.f32 %v1768, 0.0
    %v2287 = vmax.f32 %v1773, 0.0
    %v2288 = vmax.f32 %v1776, 0.0
    %v2289 = vmax.f32 %v1781, 0.0
    %v2290 = vmax.f32 %v1784, 0.0
    %v2291 = vmax.f32 %v1789, 0.0
    %v2292 = vmax.f32 %v1792, 0.0
    %v2293 = vmax.f32 %v1797, 0.0
    %v2294 = vmax.f32 %v1800, 0.0
    %v2295 = vmax.f32 %v1805, 0.0
    %v2296 = vmax.f32 %v1808, 0.0
    %v2297 = vmax.f32 %v1813, 0.0
    %v2298 = vmax.f32 %v1816, 0.0
    %v2299 = vmax.f32 %v1821, 0.0
    %v2300 = vmax.f32 %v1824, 0.0
    %v2301 = vmax.f32 %v1829, 0.0
    %v2302 = vmax.f32 %v1832, 0.0
    %v2303 = vmax.f32 %v1837, 0.0
    %v2304 = vmax.f32 %v1840, 0.0
    %v2305 = vmax.f32 %v1845, 0.0
    %v2306 = vmax.f32 %v1848, 0.0
    %v2307 = vmax.f32 %v1853, 0.0
    %v2308 = vmax.f32 %v1856, 0.0
    %v2309 = vmax.f32 %v1861, 0.0
    %v2310 = vmax.f32 %v1864, 0.0
    %v2311 = vmax.f32 %v1869, 0.0
    %v2312 = vmax.f32 %v1872, 0.0
    %v2313 = vmax.f32 %v1877, 0.0
    %v2314 = vmax.f32 %v1880, 0.0
    %v2315 = vmax.f32 %v1885, 0.0
    %v2316 = vmax.f32 %v1888, 0.0
    %v2317 = vmax.f32 %v1893, 0.0
    %v2318 = vmax.f32 %v1896, 0.0
    %v2319 = vmax.f32 %v1901, 0.0
    %v2320 = vmax.f32 %v1904, 0.0
    %v2321 = vmax.f32 %v1909, 0.0
    %v2322 = vmax.f32 %v1912, 0.0
    %v2323 = vmax.f32 %v1917, 0.0
    %v2324 = vmax.f32 %v1920, 0.0
    %v2325 = vmax.f32 %v1925, 0.0
    %v2326 = vmax.f32 %v1928, 0.0
    %v2327 = vmax.f32 %v1933, 0.0
    %v2328 = vmax.f32 %v1936, 0.0
    %v2329 = vmax.f32 %v1941, 0.0
    %v2330 = vmax.f32 %v1944, 0.0
    %v2331 = vmax.f32 %v1949, 0.0
    %v2332 = vmax.f32 %v1952, 0.0
    %v2333 = vmax.f32 %v1957, 0.0
    %v2334 = vmax.f32 %v1960, 0.0
    %v2335 = vmax.f32 %v1965, 0.0
    %v2336 = vmax.f32 %v1968, 0.0
    %v2337 = vmax.f32 %v1973, 0.0
    %v2338 = vmax.f32 %v1976, 0.0
    %v2339 = vmax.f32 %v1981, 0.0
    %v2340 = vmax.f32 %v1984, 0.0
    %v2341 = vmax.f32 %v1989, 0.0
    %v2342 = vmax.f32 %v1992, 0.0
    %v2343 = vmax.f32 %v1997, 0.0
    %v2344 = vmax.f32 %v2000, 0.0
    %v2345 = vmax.f32 %v2005, 0.0
    %v2346 = vmax.f32 %v2008, 0.0
    %v2347 = vmax.f32 %v2013, 0.0
    %v2348 = vmax.f32 %v2016, 0.0
    %v2349 = vmax.f32 %v2021, 0.0
    %v2350 = vmax.f32 %v2024, 0.0
    %v2351 = vmax.f32 %v2029, 0.0
    %v2352 = vmax.f32 %v2032, 0.0
    %v2353 = vmax.f32 %v2037, 0.0
    %v2354 = vmax.f32 %v2040, 0.0
    %v2355 = vmax.f32 %v2045, 0.0
    %v2356 = vmax.f32 %v2048, 0.0
    %v2357 = vmax.f32 %v2053, 0.0
    %v2358 = vmax.f32 %v2056, 0.0
    %v2359 = vmax.f32 %v2061, 0.0
    %v2360 = vmax.f32 %v2064, 0.0
    %v2361 = vmax.f32 %v2069, 0.0
    %v2362 = vmax.f32 %v2072, 0.0
    %v2363 = vmax.f32 %v2077, 0.0
    %v2364 = vmax.f32 %v2080, 0.0
    %v2365 = vmax.f32 %v2085, 0.0
    %v2366 = vmax.f32 %v2088, 0.0
    %v2367 = vmax.f32 %v2093, 0.0
    %v2368 = vmax.f32 %v2096, 0.0
    %v2369 = vmax.f32 %v2101, 0.0
    %v2370 = vmax.f32 %v2104, 0.0
    %v2371 = vmax.f32 %v2109, 0.0
    %v2372 = vmax.f32 %v2112, 0.0
    %v2373 = vmax.f32 %v2117, 0.0
    %v2374 = vmax.f32 %v2120, 0.0
    %v2375 = vmax.f32 %v2125, 0.0
    %v2376 = vmax.f32 %v2128, 0.0
    %v2377 = vmax.f32 %v2133, 0.0
    %v2378 = vmax.f32 %v2136, 0.0
    %v2379 = vmax.f32 %v2141, 0.0
    %v2380 = vmax.f32 %v2144, 0.0
    %v2381 = vmax.f32 %v2149, 0.0
    %v2382 = vmax.f32 %v2152, 0.0
    %v2383 = vmax.f32 %v2157, 0.0
    %v2384 = vmax.f32 %v2160, 0.0
    %v2385 = vmax.f32 %v2165, 0.0
    %v2386 = vmax.f32 %v2168, 0.0
    %v2387 = vmax.f32 %v2173, 0.0
    %v2388 = vmax.f32 %v2176, 0.0
    %v2389 = vmax.f32 %v2181, 0.0
    %v2390 = vmax.f32 %v2184, 0.0
    %v2391 = vmax.f32 %v2189, 0.0
    %v2392 = vmax.f32 %v2192, 0.0
    %v2393 = vmax.f32 %v2197, 0.0
    %v2394 = vmax.f32 %v2200, 0.0
    %v2395 = vmax.f32 %v2205, 0.0
    %v2396 = vmax.f32 %v2208, 0.0
    %v2397 = vmax.f32 %v2213, 0.0
    %v2398 = vmax.f32 %v2216, 0.0
    %v2399 = vmax.f32 %v2221, 0.0
    %v2400 = vmax.f32 %v2224, 0.0
    %v2401 = vmax.f32 %v2229, 0.0
    %v2402 = vmax.f32 %v2232, 0.0
    %v2403 = vmax.f32 %v2237, 0.0
    %v2404 = vmax.f32 %v2240, 0.0
    %v2405 = vmax.f32 %v2245, 0.0
    %v2406 = vmax.f32 %v2248, 0.0
    %v2407 = vmax.f32 %v2253, 0.0
    %v2408 = vmax.f32 %v2256, 0.0
    %v2409 = vmax.f32 %v2261, 0.0
    %v2410 = vmax.f32 %v2264, 0.0
    %v2411 = vpack.c.bf16 %v2268, %v2267
    %v2412 = vpack.c.bf16 %v2270, %v2269
    %v2413 = vpack.c.bf16 %v2272, %v2271
    %v2414 = vpack.c.bf16 %v2274, %v2273
    %v2415 = vpack.c.bf16 %v2276, %v2275
    %v2416 = vpack.c.bf16 %v2278, %v2277
    %v2417 = vpack.c.bf16 %v2280, %v2279
    %v2418 = vpack.c.bf16 %v2282, %v2281
    %v2419 = vpack.c.bf16 %v2284, %v2283
    %v2420 = vpack.c.bf16 %v2286, %v2285
    %v2421 = vpack.c.bf16 %v2288, %v2287
    %v2422 = vpack.c.bf16 %v2290, %v2289
    %v2423 = vpack.c.bf16 %v2292, %v2291
    %v2424 = vpack.c.bf16 %v2294, %v2293
    %v2425 = vpack.c.bf16 %v2296, %v2295
    %v2426 = vpack.c.bf16 %v2298, %v2297
    %v2427 = vpack.c.bf16 %v2300, %v2299
    %v2428 = vpack.c.bf16 %v2302, %v2301
    %v2429 = vpack.c.bf16 %v2304, %v2303
    %v2430 = vpack.c.bf16 %v2306, %v2305
    %v2431 = vpack.c.bf16 %v2308, %v2307
    %v2432 = vpack.c.bf16 %v2310, %v2309
    %v2433 = vpack.c.bf16 %v2312, %v2311
    %v2434 = vpack.c.bf16 %v2314, %v2313
    %v2435 = vpack.c.bf16 %v2316, %v2315
    %v2436 = vpack.c.bf16 %v2318, %v2317
    %v2437 = vpack.c.bf16 %v2320, %v2319
    %v2438 = vpack.c.bf16 %v2322, %v2321
    %v2439 = vpack.c.bf16 %v2324, %v2323
    %v2440 = vpack.c.bf16 %v2326, %v2325
    %v2441 = vpack.c.bf16 %v2328, %v2327
    %v2442 = vpack.c.bf16 %v2330, %v2329
    %v2443 = vpack.c.bf16 %v2332, %v2331
    %v2444 = vpack.c.bf16 %v2334, %v2333
    %v2445 = vpack.c.bf16 %v2336, %v2335
    %v2446 = vpack.c.bf16 %v2338, %v2337
    %v2447 = vpack.c.bf16 %v2340, %v2339
    %v2448 = vpack.c.bf16 %v2342, %v2341
    %v2449 = vpack.c.bf16 %v2344, %v2343
    %v2450 = vpack.c.bf16 %v2346, %v2345
    %v2451 = vpack.c.bf16 %v2348, %v2347
    %v2452 = vpack.c.bf16 %v2350, %v2349
    %v2453 = vpack.c.bf16 %v2352, %v2351
    %v2454 = vpack.c.bf16 %v2354, %v2353
    %v2455 = vpack.c.bf16 %v2356, %v2355
    %v2456 = vpack.c.bf16 %v2358, %v2357
    %v2457 = vpack.c.bf16 %v2360, %v2359
    %v2458 = vpack.c.bf16 %v2362, %v2361
    %v2459 = vpack.c.bf16 %v2364, %v2363
    %v2460 = vpack.c.bf16 %v2366, %v2365
    %v2461 = vpack.c.bf16 %v2368, %v2367
    %v2462 = vpack.c.bf16 %v2370, %v2369
    %v2463 = vpack.c.bf16 %v2372, %v2371
    %v2464 = vpack.c.bf16 %v2374, %v2373
    %v2465 = vpack.c.bf16 %v2376, %v2375
    %v2466 = vpack.c.bf16 %v2378, %v2377
    %v2467 = vpack.c.bf16 %v2380, %v2379
    %v2468 = vpack.c.bf16 %v2382, %v2381
    %v2469 = vpack.c.bf16 %v2384, %v2383
    %v2470 = vpack.c.bf16 %v2386, %v2385
    %v2471 = vpack.c.bf16 %v2388, %v2387
    %v2472 = vpack.c.bf16 %v2390, %v2389
    %v2473 = vpack.c.bf16 %v2392, %v2391
    %v2474 = vpack.c.bf16 %v2394, %v2393
    %v2475 = vpack.c.bf16 %v2396, %v2395
    %v2476 = vpack.c.bf16 %v2398, %v2397
    %v2477 = vpack.c.bf16 %v2400, %v2399
    %v2478 = vpack.c.bf16 %v2402, %v2401
    %v2479 = vpack.c.bf16 %v2404, %v2403
    %v2480 = vpack.c.bf16 %v2406, %v2405
    %v2481 = vpack.c.bf16 %v2408, %v2407
    %v2482 = vpack.c.bf16 %v2410, %v2409
    %v2483 = vld [vmem:[%s5] sm:$0xff]
    %v2484 = vld [vmem:[%s5 + $0x8] sm:$0xff]
    %v2485 = vld [vmem:[%s5 + $0x10] sm:$0xff]
    %v2486 = vld [vmem:[%s5 + $0x18] sm:$0xff]
    %v2487 = vld [vmem:[%s5 + $0x20] sm:$0xf]
    %v2488 = vld [vmem:[%s5 + $0x24] sm:$0xff]
    %v2489 = vld [vmem:[%s5 + $0x2c] sm:$0xff]
    %v2490 = vld [vmem:[%s5 + $0x34] sm:$0xff]
    %v2491 = vld [vmem:[%s5 + $0x3c] sm:$0xff]
    %v2492 = vld [vmem:[%s5 + $0x44] sm:$0xf]
    %v2493 = vld [vmem:[%s5 + $0x48] sm:$0xff]
    %v2494 = vld [vmem:[%s5 + $0x50] sm:$0xff]
    %v2495 = vld [vmem:[%s5 + $0x58] sm:$0xff]
    %v2496 = vld [vmem:[%s5 + $0x60] sm:$0xff]
    %v2497 = vld [vmem:[%s5 + $0x68] sm:$0xf]
    %v2498 = vld [vmem:[%s5 + $0x6c] sm:$0xff]
    %v2499 = vld [vmem:[%s5 + $0x74] sm:$0xff]
    %v2500 = vld [vmem:[%s5 + $0x7c] sm:$0xff]
    %v2501 = vld [vmem:[%s5 + $0x84] sm:$0xff]
    %v2502 = vld [vmem:[%s5 + $0x8c] sm:$0xf]
    %v2503 = vld [vmem:[%s6] sm:$0xff]
    %v2504 = vld [vmem:[%s6 + $0x8] sm:$0xff]
    %v2505 = vld [vmem:[%s6 + $0x10] sm:$0xff]
    %v2506 = vld [vmem:[%s6 + $0x18] sm:$0xff]
    %2508 = vset.pattern.permute.xlu0 0
    %2509 = vperm.xlu0 %2508, %v2503
    %v2510 = vpop.permute.xlu0 %2509
    %2513 = vset.pattern.permute.xlu0 0
    %2514 = vperm.xlu0 %2513, %v2504
    %v2515 = vpop.permute.xlu0 %2514
    %2518 = vset.pattern.permute.xlu0 0
    %2519 = vperm.xlu0 %2518, %v2505
    %v2520 = vpop.permute.xlu0 %2519
    %2523 = vset.pattern.permute.xlu0 0
    %2524 = vperm.xlu0 %2523, %v2506
    %v2525 = vpop.permute.xlu0 %2524
    %v2547 = vunpack.c.l.b16 %v2483
    %v2548 = vunpack.c.h.b16 %v2483
    %v2549 = vunpack.c.l.b16 %v2484
    %v2550 = vunpack.c.h.b16 %v2484
    %v2551 = vunpack.c.l.b16 %v2485
    %v2552 = vunpack.c.h.b16 %v2485
    %v2553 = vunpack.c.l.b16 %v2486
    %v2554 = vunpack.c.h.b16 %v2486
    %v2555 = vunpack.c.l.b16 %v2487
    %v2556 = vunpack.c.l.b16 %v2488
    %v2557 = vunpack.c.h.b16 %v2488
    %v2558 = vunpack.c.l.b16 %v2489
    %v2559 = vunpack.c.h.b16 %v2489
    %v2560 = vunpack.c.l.b16 %v2490
    %v2561 = vunpack.c.h.b16 %v2490
    %v2562 = vunpack.c.l.b16 %v2491
    %v2563 = vunpack.c.h.b16 %v2491
    %v2564 = vunpack.c.l.b16 %v2492
    %v2565 = vunpack.c.l.b16 %v2493
    %v2566 = vunpack.c.h.b16 %v2493
    %v2567 = vunpack.c.l.b16 %v2494
    %v2568 = vunpack.c.h.b16 %v2494
    %v2569 = vunpack.c.l.b16 %v2495
    %v2570 = vunpack.c.h.b16 %v2495
    %v2571 = vunpack.c.l.b16 %v2496
    %v2572 = vunpack.c.h.b16 %v2496
    %v2573 = vunpack.c.l.b16 %v2497
    %v2574 = vunpack.c.l.b16 %v2498
    %v2575 = vunpack.c.h.b16 %v2498
    %v2576 = vunpack.c.l.b16 %v2499
    %v2577 = vunpack.c.h.b16 %v2499
    %v2578 = vunpack.c.l.b16 %v2500
    %v2579 = vunpack.c.h.b16 %v2500
    %v2580 = vunpack.c.l.b16 %v2501
    %v2581 = vunpack.c.h.b16 %v2501
    %v2582 = vunpack.c.l.b16 %v2502
    %v2583 = vpack.c.b16 %v2556, %v2547
    %v2584 = vpack.c.b16 %v2557, %v2548
    %v2585 = vpack.c.b16 %v2558, %v2549
    %v2586 = vpack.c.b16 %v2559, %v2550
    %v2587 = vpack.c.b16 %v2560, %v2551
    %v2588 = vpack.c.b16 %v2561, %v2552
    %v2589 = vpack.c.b16 %v2562, %v2553
    %v2590 = vpack.c.b16 %v2563, %v2554
    %v2591 = vpack.c.b16 %v2564, %v2555
    %v2592 = vpack.c.b16 %v2574, %v2565
    %v2593 = vpack.c.b16 %v2575, %v2566
    %v2594 = vpack.c.b16 %v2576, %v2567
    %v2595 = vpack.c.b16 %v2577, %v2568
    %v2596 = vpack.c.b16 %v2578, %v2569
    %v2597 = vpack.c.b16 %v2579, %v2570
    %v2598 = vpack.c.b16 %v2580, %v2571
    %v2599 = vpack.c.b16 %v2581, %v2572
    %v2600 = vpack.c.b16 %v2582, %v2573
    %2619 = vmatprep.subr.bf16.mxu0 0
    %2620 = vmatpush1.bf16.msra.mxu0 %v2411
    %2621 = vmatprep.subr.bf16.mxu0 0
    %2622 = vmatpush1.bf16.msra.mxu0 %v2412
    %2623 = vmatprep.subr.bf16.mxu0 0
    %2624 = vmatpush1.bf16.msra.mxu0 %v2413
    %2625 = vmatprep.subr.bf16.mxu0 0
    %2626 = vmatpush1.bf16.msra.mxu0 %v2414
    %2627 = vmatprep.subr.bf16.mxu0 0
    %2628 = vmatpush1.bf16.msra.mxu0 %v2415
    %2629 = vmatprep.subr.bf16.mxu0 0
    %2630 = vmatpush1.bf16.msra.mxu0 %v2416
    %2631 = vmatprep.subr.bf16.mxu0 0
    %2632 = vmatpush1.bf16.msra.mxu0 %v2417
    %2633 = vmatprep.subr.bf16.mxu0 0
    %2634 = vmatpush1.bf16.msra.mxu0 %v2418
    %2635 = vmatprep.subr.bf16.mxu0 0
    %2636 = vmatpush1.bf16.msra.mxu0 %v2419
    %2637 = vmatprep.subr.bf16.mxu0 0
    %2638 = vmatpush1.bf16.msra.mxu0 %v2420
    %2639 = vmatprep.subr.bf16.mxu0 0
    %2640 = vmatpush1.bf16.msra.mxu0 %v2421
    %2641 = vmatprep.subr.bf16.mxu0 0
    %2642 = vmatpush1.bf16.msra.mxu0 %v2422
    %2643 = vmatprep.subr.bf16.mxu0 0
    %2644 = vmatpush1.bf16.msra.mxu0 %v2423
    %2645 = vmatprep.subr.bf16.mxu0 0
    %2646 = vmatpush1.bf16.msra.mxu0 %v2424
    %2647 = vmatprep.subr.bf16.mxu0 0
    %2648 = vmatpush1.bf16.msra.mxu0 %v2425
    %2649 = vmatprep.subr.bf16.mxu0 0
    %2650 = vmatpush1.bf16.msra.mxu0 %v2426
    %2651 = vmatprep.mubr.bf16.mxu0 %v2584
    %2652 = vmatmul.mubr.bf16.gmra.mrb[0].mxu0 %v2583
    %v2653 = vpop.f32.mrb[0].mxu0
    %v2654 = vadd.f32 %v2510, %v2653
    %v2655 = vpop.f32.mrb[0].mxu0
    %v2656 = vpop.f32.mrb[0].mxu0
    %v2657 = vadd.f32 %v2515, %v2656
    %v2658 = vpop.f32.mrb[0].mxu0
    %2659 = vmatprep.mubr.bf16.mxu0 %v2593
    %2660 = vmatmul.mubr.bf16.gmra.mrb[0].mxu0 %v2592
    %v2661 = vpop.f32.mrb[0].mxu0
    %v2662 = vadd.f32 %v2520, %v2661
    %v2663 = vpop.f32.mrb[0].mxu0
    %v2664 = vpop.f32.mrb[0].mxu0
    %v2665 = vadd.f32 %v2525, %v2664
    %v2666 = vpop.f32.mrb[0].mxu0
    %2667 = vdwg.mxu0
    %2668 = vmatprep.subr.bf16.mxu0 0
    %2669 = vmatpush1.bf16.msra.mxu0 %v2427
    %2670 = vmatprep.subr.bf16.mxu0 0
    %2671 = vmatpush1.bf16.msra.mxu0 %v2428
    %2672 = vmatprep.subr.bf16.mxu0 0
    %2673 = vmatpush1.bf16.msra.mxu0 %v2429
    %2674 = vmatprep.subr.bf16.mxu0 0
    %2675 = vmatpush1.bf16.msra.mxu0 %v2430
    %2676 = vmatprep.subr.bf16.mxu0 0
    %2677 = vmatpush1.bf16.msra.mxu0 %v2431
    %2678 = vmatprep.subr.bf16.mxu0 0
    %2679 = vmatpush1.bf16.msra.mxu0 %v2432
    %2680 = vmatprep.subr.bf16.mxu0 0
    %2681 = vmatpush1.bf16.msra.mxu0 %v2433
    %2682 = vmatprep.subr.bf16.mxu0 0
    %2683 = vmatpush1.bf16.msra.mxu0 %v2434
    %2684 = vmatprep.subr.bf16.mxu0 0
    %2685 = vmatpush1.bf16.msra.mxu0 %v2435
    %2686 = vmatprep.subr.bf16.mxu0 0
    %2687 = vmatpush1.bf16.msra.mxu0 %v2436
    %2688 = vmatprep.subr.bf16.mxu0 0
    %2689 = vmatpush1.bf16.msra.mxu0 %v2437
    %2690 = vmatprep.subr.bf16.mxu0 0
    %2691 = vmatpush1.bf16.msra.mxu0 %v2438
    %2692 = vmatprep.subr.bf16.mxu0 0
    %2693 = vmatpush1.bf16.msra.mxu0 %v2439
    %2694 = vmatprep.subr.bf16.mxu0 0
    %2695 = vmatpush1.bf16.msra.mxu0 %v2440
    %2696 = vmatprep.subr.bf16.mxu0 0
    %2697 = vmatpush1.bf16.msra.mxu0 %v2441
    %2698 = vmatprep.subr.bf16.mxu0 0
    %2699 = vmatpush1.bf16.msra.mxu0 %v2442
    %2700 = vmatprep.mubr.bf16.mxu0 %v2586
    %2701 = vmatmul.mubr.bf16.gmra.mrb[0].mxu0 %v2585
    %v2702 = vpop.f32.mrb[0].mxu0
    %v2703 = vadd.f32 %v2654, %v2702
    %v2704 = vpop.f32.mrb[0].mxu0
    %v2705 = vpop.f32.mrb[0].mxu0
    %v2706 = vadd.f32 %v2657, %v2705
    %v2707 = vpop.f32.mrb[0].mxu0
    %2708 = vmatprep.mubr.bf16.mxu0 %v2595
    %2709 = vmatmul.mubr.bf16.gmra.mrb[0].mxu0 %v2594
    %v2710 = vpop.f32.mrb[0].mxu0
    %v2711 = vadd.f32 %v2662, %v2710
    %v2712 = vpop.f32.mrb[0].mxu0
    %v2713 = vpop.f32.mrb[0].mxu0
    %v2714 = vadd.f32 %v2665, %v2713
    %v2715 = vpop.f32.mrb[0].mxu0
    %2716 = vdwg.mxu0
    %2717 = vmatprep.subr.bf16.mxu0 0
    %2718 = vmatpush1.bf16.msra.mxu0 %v2443
    %2719 = vmatprep.subr.bf16.mxu0 0
    %2720 = vmatpush1.bf16.msra.mxu0 %v2444
    %2721 = vmatprep.subr.bf16.mxu0 0
    %2722 = vmatpush1.bf16.msra.mxu0 %v2445
    %2723 = vmatprep.subr.bf16.mxu0 0
    %2724 = vmatpush1.bf16.msra.mxu0 %v2446
    %2725 = vmatprep.subr.bf16.mxu0 0
    %2726 = vmatpush1.bf16.msra.mxu0 %v2447
    %2727 = vmatprep.subr.bf16.mxu0 0
    %2728 = vmatpush1.bf16.msra.mxu0 %v2448
    %2729 = vmatprep.subr.bf16.mxu0 0
    %2730 = vmatpush1.bf16.msra.mxu0 %v2449
    %2731 = vmatprep.subr.bf16.mxu0 0
    %2732 = vmatpush1.bf16.msra.mxu0 %v2450
    %2733 = vmatprep.subr.bf16.mxu0 0
    %2734 = vmatpush1.bf16.msra.mxu0 %v2451
    %2735 = vmatprep.subr.bf16.mxu0 0
    %2736 = vmatpush1.bf16.msra.mxu0 %v2452
    %2737 = vmatprep.subr.bf16.mxu0 0
    %2738 = vmatpush1.bf16.msra.mxu0 %v2453
    %2739 = vmatprep.subr.bf16.mxu0 0
    %2740 = vmatpush1.bf16.msra.mxu0 %v2454
    %2741 = vmatprep.subr.bf16.mxu0 0
    %2742 = vmatpush1.bf16.msra.mxu0 %v2455
    %2743 = vmatprep.subr.bf16.mxu0 0
    %2744 = vmatpush1.bf16.msra.mxu0 %v2456
    %2745 = vmatprep.subr.bf16.mxu0 0
    %2746 = vmatpush1.bf16.msra.mxu0 %v2457
    %2747 = vmatprep.subr.bf16.mxu0 0
    %2748 = vmatpush1.bf16.msra.mxu0 %v2458
    %2749 = vmatprep.mubr.bf16.mxu0 %v2588
    %2750 = vmatmul.mubr.bf16.gmra.mrb[0].mxu0 %v2587
    %v2751 = vpop.f32.mrb[0].mxu0
    %v2752 = vadd.f32 %v2703, %v2751
    %v2753 = vpop.f32.mrb[0].mxu0
    %v2754 = vpop.f32.mrb[0].mxu0
    %v2755 = vadd.f32 %v2706, %v2754
    %v2756 = vpop.f32.mrb[0].mxu0
    %2757 = vmatprep.mubr.bf16.mxu0 %v2597
    %2758 = vmatmul.mubr.bf16.gmra.mrb[0].mxu0 %v2596
    %v2759 = vpop.f32.mrb[0].mxu0
    %v2760 = vadd.f32 %v2711, %v2759
    %v2761 = vpop.f32.mrb[0].mxu0
    %v2762 = vpop.f32.mrb[0].mxu0
    %v2763 = vadd.f32 %v2714, %v2762
    %v2764 = vpop.f32.mrb[0].mxu0
    %2765 = vdwg.mxu0
    %2766 = vmatprep.subr.bf16.mxu0 0
    %2767 = vmatpush1.bf16.msra.mxu0 %v2459
    %2768 = vmatprep.subr.bf16.mxu0 0
    %2769 = vmatpush1.bf16.msra.mxu0 %v2460
    %2770 = vmatprep.subr.bf16.mxu0 0
    %2771 = vmatpush1.bf16.msra.mxu0 %v2461
    %2772 = vmatprep.subr.bf16.mxu0 0
    %2773 = vmatpush1.bf16.msra.mxu0 %v2462
    %2774 = vmatprep.subr.bf16.mxu0 0
    %2775 = vmatpush1.bf16.msra.mxu0 %v2463
    %2776 = vmatprep.subr.bf16.mxu0 0
    %2777 = vmatpush1.bf16.msra.mxu0 %v2464
    %2778 = vmatprep.subr.bf16.mxu0 0
    %2779 = vmatpush1.bf16.msra.mxu0 %v2465
    %2780 = vmatprep.subr.bf16.mxu0 0
    %2781 = vmatpush1.bf16.msra.mxu0 %v2466
    %2782 = vmatprep.subr.bf16.mxu0 0
    %2783 = vmatpush1.bf16.msra.mxu0 %v2467
    %2784 = vmatprep.subr.bf16.mxu0 0
    %2785 = vmatpush1.bf16.msra.mxu0 %v2468
    %2786 = vmatprep.subr.bf16.mxu0 0
    %2787 = vmatpush1.bf16.msra.mxu0 %v2469
    %2788 = vmatprep.subr.bf16.mxu0 0
    %2789 = vmatpush1.bf16.msra.mxu0 %v2470
    %2790 = vmatprep.subr.bf16.mxu0 0
    %2791 = vmatpush1.bf16.msra.mxu0 %v2471
    %2792 = vmatprep.subr.bf16.mxu0 0
    %2793 = vmatpush1.bf16.msra.mxu0 %v2472
    %2794 = vmatprep.subr.bf16.mxu0 0
    %2795 = vmatpush1.bf16.msra.mxu0 %v2473
    %2796 = vmatprep.subr.bf16.mxu0 0
    %2797 = vmatpush1.bf16.msra.mxu0 %v2474
    %2798 = vmatprep.mubr.bf16.mxu0 %v2590
    %2799 = vmatmul.mubr.bf16.gmra.mrb[0].mxu0 %v2589
    %v2800 = vpop.f32.mrb[0].mxu0
    %v2801 = vadd.f32 %v2752, %v2800
    %v2802 = vpop.f32.mrb[0].mxu0
    %v2803 = vpop.f32.mrb[0].mxu0
    %v2804 = vadd.f32 %v2755, %v2803
    %v2805 = vpop.f32.mrb[0].mxu0
    %2806 = vmatprep.mubr.bf16.mxu0 %v2599
    %2807 = vmatmul.mubr.bf16.gmra.mrb[0].mxu0 %v2598
    %v2808 = vpop.f32.mrb[0].mxu0
    %v2809 = vadd.f32 %v2760, %v2808
    %v2810 = vpop.f32.mrb[0].mxu0
    %v2811 = vpop.f32.mrb[0].mxu0
    %v2812 = vadd.f32 %v2763, %v2811
    %v2813 = vpop.f32.mrb[0].mxu0
    %2814 = vdwg.mxu0
    %2815 = vmatprep.subr.bf16.mxu0 0
    %2816 = vmatpush1.bf16.msra.mxu0 %v2475
    %2817 = vmatprep.subr.bf16.mxu0 0
    %2818 = vmatpush1.bf16.msra.mxu0 %v2476
    %2819 = vmatprep.subr.bf16.mxu0 0
    %2820 = vmatpush1.bf16.msra.mxu0 %v2477
    %2821 = vmatprep.subr.bf16.mxu0 0
    %2822 = vmatpush1.bf16.msra.mxu0 %v2478
    %2823 = vmatprep.subr.bf16.mxu0 0
    %2824 = vmatpush1.bf16.msra.mxu0 %v2479
    %2825 = vmatprep.subr.bf16.mxu0 0
    %2826 = vmatpush1.bf16.msra.mxu0 %v2480
    %2827 = vmatprep.subr.bf16.mxu0 0
    %2828 = vmatpush1.bf16.msra.mxu0 %v2481
    %2829 = vmatprep.subr.bf16.mxu0 0
    %2830 = vmatpush1.bf16.msra.mxu0 %v2482
    %2831 = vmatprep.subr.bf16.mxu0 0
    %2832 = vmatpush1.bf16.msra.mxu0 0
    %2833 = vmatprep.subr.bf16.mxu0 0
    %2834 = vmatpush1.bf16.msra.mxu0 0
    %2835 = vmatprep.subr.bf16.mxu0 0
    %2836 = vmatpush1.bf16.msra.mxu0 0
    %2837 = vmatprep.subr.bf16.mxu0 0
    %2838 = vmatpush1.bf16.msra.mxu0 0
    %2839 = vmatprep.subr.bf16.mxu0 0
    %2840 = vmatpush1.bf16.msra.mxu0 0
    %2841 = vmatprep.subr.bf16.mxu0 0
    %2842 = vmatpush1.bf16.msra.mxu0 0
    %2843 = vmatprep.subr.bf16.mxu0 0
    %2844 = vmatpush1.bf16.msra.mxu0 0
    %2845 = vmatprep.subr.bf16.mxu0 0
    %2846 = vmatpush1.bf16.msra.mxu0 0
    %2847 = vmatprep.mubr.bf16.mxu0 0
    %2848 = vmatmul.mubr.bf16.gmra.mrb[0].mxu0 %v2591
    %v2849 = vpop.f32.mrb[0].mxu0
    %v2850 = vadd.f32 %v2801, %v2849
    %v2851 = vpop.f32.mrb[0].mxu0
    %v2852 = vpop.f32.mrb[0].mxu0
    %v2853 = vadd.f32 %v2804, %v2852
    %v2854 = vpop.f32.mrb[0].mxu0
    %2855 = vmatprep.mubr.bf16.mxu0 0
    %2856 = vmatmul.mubr.bf16.gmra.mrb[0].mxu0 %v2600
    %v2857 = vpop.f32.mrb[0].mxu0
    %v2858 = vadd.f32 %v2809, %v2857
    %v2859 = vpop.f32.mrb[0].mxu0
    %v2860 = vpop.f32.mrb[0].mxu0
    %v2861 = vadd.f32 %v2812, %v2860
    %v2862 = vpop.f32.mrb[0].mxu0
    %2863 = vdwg.mxu0
    %v2864 = vmax.f32 %v2850, 0.0
    %v2865 = vmax.f32 %v2853, 0.0
    %v2866 = vmax.f32 %v2858, 0.0
    %v2867 = vmax.f32 %v2861, 0.0
    %v2868 = vmul.f32 %v2864, %v156
    %v2869 = vmul.f32 %v2865, %v159
    %v2870 = vmul.f32 %v2866, %v164
    %v2871 = vmul.f32 %v2867, %v167
    %v2872 = vadd.f32 %v2868, %v2869
    %v2873 = vadd.f32 %v2872, %v2870
    %v2874 = vadd.f32 %v2873, %v2871
    %v2875 = vrot.slane %v2874, 4
    %v2876 = vadd.f32 %v2874, %v2875
    %v2877 = vrot.slane %v2876, 2
    %v2878 = vadd.f32 %v2876, %v2877
    %v2879 = vrot.slane %v2878, 1
    %v2880 = vadd.f32 %v2878, %v2879
    %v2881 = vxor.u32 %v2880, 2147483648
    %v2882 = vmul.f32 %v2881, 1.442695
    %v2883 = vpow.pop %v2882
    %v2884 = vadd.f32 %v2883, 1.0
    %v2885 = vrcp.pop %v2884
    %v2886 = vmul.f32 1.0, %v2885
    %2887 = vst [vmem:[#allocation2] sm:$0x1] %v2886
    // Predicated region
    $region30: #{tpu_custom_call.1} parent=1 // pred_check
      _
    $region31: #{tpu_custom_call.1} parent=1 // pred_check_branch
      %2889 = sbr.rel (0) target = $region33
    $region32: #{tpu_custom_call.1} parent=1 // pred_region
      %s2891 = ssub.s32 16, 16
      %2892 = vsyncadd [#allocation3], %s2891
      %s2894 = sshll.u32 [#allocation2], 4
      %s2895 = int_to_ptr.vmem [resolvable:$true] %s2894
      %2897 = dma.vmem_to_hbm [thread:$0]  %s2895, 16, %s7, [#allocation3]
    $region33: #{tpu_custom_call.1} parent=1 // pred_fallthru
      _
    // Predicated region
    $region34: #{tpu_custom_call.1} parent=1 // pred_check
      _
    $region35: #{tpu_custom_call.1} parent=1 // pred_check_branch
      %2899 = sbr.rel (0) target = $region37
    $region36: #{tpu_custom_call.1} parent=1 // pred_region
      %2900 = dma.done [#allocation3], 16
    $region37: #{tpu_custom_call.1} parent=1 // pred_fallthru
      _
    %2901 = vsyncpa [#allocation3], 1

</llo_original>
